<compile_context>
chip_gen: v7x
topology: tpu7x:2x2x1
jax: 0.10.0
libtpu: 0.0.40
codegen_flags: <defaults>
</compile_context>

<pallas_src>
import math
import functools

import numpy as np
import jax
import jax.numpy as jnp
from jax.experimental import pallas as pl
from jax.experimental.pallas import tpu as pltpu


def _build_tables(num_pos_feats, temperature):
    """Per-channel constants, shape (2F, 4) float32.

    col 0: 1/dim_t   for the y/x halves (same table duplicated per half)
    col 1: phase     for the y/x halves ((c % 2) * pi/2; cos(v) == sin(v + pi/2))
    col 2: 1/dim_t_z for the temporal (z) term over the full 2F channels
    col 3: phase     for the temporal (z) term
    """
    F = num_pos_feats
    C = 2 * F
    temp = np.float32(temperature)

    i = np.arange(F, dtype=np.float32)
    dim_t = np.power(temp, (2.0 * np.floor(i / 2.0) / np.float32(F)).astype(np.float32))
    inv_yx = (1.0 / dim_t.astype(np.float64)).astype(np.float32)
    ph_yx = (i.astype(np.int32) % 2).astype(np.float32) * np.float32(np.pi / 2.0)

    j = np.arange(C, dtype=np.float32)
    dim_t_z = np.power(temp, (2.0 * np.floor(j / 2.0) / np.float32(C)).astype(np.float32))
    inv_z = (1.0 / dim_t_z.astype(np.float64)).astype(np.float32)
    ph_z = (j.astype(np.int32) % 2).astype(np.float32) * np.float32(np.pi / 2.0)

    tab = np.zeros((C, 4), dtype=np.float32)
    tab[:F, 0] = inv_yx
    tab[F:, 0] = inv_yx
    tab[:F, 1] = ph_yx
    tab[F:, 1] = ph_yx
    tab[:, 2] = inv_z
    tab[:, 3] = ph_z
    return jnp.asarray(tab)


def _pos_kernel_fast(tab_ref, yx_ref, *args, num_pos_feats, add_temporal):
    """mask=None fast path. Writes one (tbt, 2F, nt) channel-major output tile.

    tab_ref : (2F, 4)      per-channel constants (see _build_tables)
    yx_ref  : (2, nt)      row 0 = y positions, row 1 = x positions (pre-scaled)
    zval_ref: (tbt, 1, 1)  per-row temporal position (only if add_temporal)
    o_ref   : (tbt, 2F, nt); rows [0,F) = y half, rows [F,2F) = x half
    """
    F = num_pos_feats
    if add_temporal:
        zval_ref, o_ref = args
    else:
        (o_ref,) = args
    tbt, _, nt = o_ref.shape

    inv = tab_ref[:F, 0:1][None]      # (1, F, 1)
    ph = tab_ref[:F, 1:2][None]       # (1, F, 1)

    if add_temporal:
        # Temporal term has no spatial dependence: one sin per (row, channel),
        # broadcast over the H*W lane axis (hoisted out of the per-pixel path).
        zt = jnp.sin(zval_ref[...] * tab_ref[:, 2:3][None]
                     + tab_ref[:, 3:4][None])            # (tbt, 2F, 1)

    # y half: compute + store before touching the x half (lower VMEM peak).
    sy = jnp.sin(yx_ref[0:1, :][None] * inv + ph)         # (1, F, nt)
    if add_temporal:
        o_ref[:, :F, :] = (sy + zt[:, :F, :]).astype(o_ref.dtype)
    else:
        o_ref[:, :F, :] = jnp.broadcast_to(sy, (tbt, F, nt)).astype(o_ref.dtype)

    sx = jnp.sin(yx_ref[1:2, :][None] * inv + ph)          # (1, F, nt)
    if add_temporal:
        o_ref[:, F:, :] = (sx + zt[:, F:, :]).astype(o_ref.dtype)
    else:
        o_ref[:, F:, :] = jnp.broadcast_to(sx, (tbt, F, nt)).astype(o_ref.dtype)


def _pos_kernel_mask(tab_ref, y_ref, x_ref, *args, num_pos_feats, add_temporal):
    """Explicit-mask path: per-pixel y/x (and optional z) position streams.

    y/x/z_ref : (tbt, 1, nt) float32 position embeds
    o_ref     : (tbt, 2F, nt)
    """
    F = num_pos_feats
    if add_temporal:
        z_ref, o_ref = args
    else:
        (o_ref,) = args

    inv = tab_ref[:F, 0:1][None]      # (1, F, 1)
    ph = tab_ref[:F, 1:2][None]

    if add_temporal:
        z = z_ref[...]                # (tbt, 1, nt)

    out_y = jnp.sin(y_ref[...] * inv + ph)                       # (tbt, F, nt)
    if add_temporal:
        out_y = out_y + jnp.sin(z * tab_ref[:F, 2:3][None] + tab_ref[:F, 3:4][None])
    o_ref[:, :F, :] = out_y.astype(o_ref.dtype)

    out_x = jnp.sin(x_ref[...] * inv + ph)                       # (tbt, F, nt)
    if add_temporal:
        out_x = out_x + jnp.sin(z * tab_ref[F:, 2:3][None] + tab_ref[F:, 3:4][None])
    o_ref[:, F:, :] = out_x.astype(o_ref.dtype)


def _pick_tiles(bt, c, n, target_bytes=4 << 20, min_steps=8):
    """Choose (tbt, nt): ~target_bytes of output per grid step, and at least
    `min_steps` bt-steps when possible (pipelined writeback + multi-core)."""
    row_bytes = c * n * 4
    if row_bytes <= target_bytes:
        tbt = max(1, target_bytes // row_bytes)
        if bt >= min_steps:
            tbt = min(tbt, bt // min_steps)
        tbt = int(max(1, min(tbt, bt)))
        nt = n
    else:
        tbt = 1
        if n < 128:
            nt = n
        else:
            nt = (target_bytes // (c * 4)) // 128 * 128
            nt = int(max(128, min(nt, n)))
    return tbt, nt


def position_embedding_sine_3d(x, mask=None, *, num_pos_feats=64,
                               temperature=10000, normalize=False, scale=None,
                               add_temporal=True):
    """JAX/Pallas equivalent of PositionEmbeddingSine3D.forward.

    x: (B, T, C, H, W). Returns (B, T, 2*num_pos_feats, H, W) float32.
    """
    assert x.ndim == 5, f'{x.shape} should be 5-dimensional'
    if scale is not None and normalize is False:
        raise ValueError('normalize should be True if scale is passed')
    if scale is None:
        scale = 2 * math.pi

    B, T, _, H, W = x.shape
    F = num_pos_feats
    C = 2 * F
    BT = B * T
    N = H * W
    eps = 1e-06

    tab = _build_tables(F, temperature)
    tbt, nt = _pick_tiles(BT, C, N)
    grid = (pl.cdiv(BT, tbt), pl.cdiv(N, nt))

    tab_spec = pl.BlockSpec((C, 4), lambda i, j: (0, 0))
    out_spec = pl.BlockSpec((tbt, C, nt), lambda i, j: (i, 0, j))
    cparams = pltpu.CompilerParams(
        dimension_semantics=("parallel", "parallel"),
        vmem_limit_bytes=32 * 1024 * 1024)

    if mask is None:
        # Fast path: positions are closed form (no cumsum, no per-pixel input
        # streams); temporal term reduced to a per-row scalar.
        yy = jnp.arange(1, H + 1, dtype=jnp.float32)
        xx = jnp.arange(1, W + 1, dtype=jnp.float32)
        if normalize:
            yy = yy / (H + eps) * scale
            xx = xx / (W + eps) * scale
        yx = jnp.stack([jnp.repeat(yy, W), jnp.tile(xx, H)], axis=0)   # (2, N)

        inputs = [tab, yx]
        in_specs = [tab_spec, pl.BlockSpec((2, nt), lambda i, j: (0, j))]
        if add_temporal:
            zz = jnp.arange(1, T + 1, dtype=jnp.float32)
            if normalize:
                zz = zz / (T + eps) * scale
            zvals = jnp.broadcast_to(zz[None], (B, T)).reshape(BT, 1, 1)
            inputs.append(zvals)
            in_specs.append(pl.BlockSpec((tbt, 1, 1), lambda i, j: (i, 0, 0)))

        kernel = functools.partial(_pos_kernel_fast, num_pos_feats=F,
                                   add_temporal=add_temporal)
    else:
        # General path: cumsum / normalize glue stays as cheap XLA ops.
        not_mask = jnp.logical_not(mask)
        z_embed = jnp.cumsum(not_mask.astype(jnp.float32), axis=1)
        y_embed = jnp.cumsum(not_mask.astype(jnp.float32), axis=2)
        x_embed = jnp.cumsum(not_mask.astype(jnp.float32), axis=3)
        if normalize:
            z_embed = z_embed / (z_embed[:, -1:, :, :] + eps) * scale
            y_embed = y_embed / (y_embed[:, :, -1:, :] + eps) * scale
            x_embed = x_embed / (x_embed[:, :, :, -1:] + eps) * scale

        emb_spec = pl.BlockSpec((tbt, 1, nt), lambda i, j: (i, 0, j))
        inputs = [tab, y_embed.reshape(BT, 1, N), x_embed.reshape(BT, 1, N)]
        in_specs = [tab_spec, emb_spec, emb_spec]
        if add_temporal:
            # z is only DMA'd when it is actually used.
            inputs.append(z_embed.reshape(BT, 1, N))
            in_specs.append(emb_spec)

        kernel = functools.partial(_pos_kernel_mask, num_pos_feats=F,
                                   add_temporal=add_temporal)

    pos_cm = pl.pallas_call(
        kernel,
        out_shape=jax.ShapeDtypeStruct((BT, C, N), jnp.float32),
        grid=grid,
        in_specs=in_specs,
        out_specs=out_spec,
        compiler_params=cparams,
    )(*inputs)

    # (BT, C, H*W) -> (B, T, C, H, W): contiguous reshape == torch's
    # .permute(0, 1, 4, 2, 3) output layout; no transpose pass over HBM.
    return pos_cm.reshape(B, T, C, H, W)


def _reference(x, mask=None, *, num_pos_feats=64, temperature=10000,
               normalize=False, scale=None, add_temporal=True):
    """Pure-JAX reference mirroring the torch code line by line."""
    if scale is None:
        scale = 2 * math.pi
    B, T, _, H, W = x.shape
    if mask is None:
        mask = jnp.zeros((B, T, H, W), dtype=jnp.bool_)
    not_mask = jnp.logical_not(mask)
    z_embed = jnp.cumsum(not_mask.astype(jnp.float32), axis=1)
    y_embed = jnp.cumsum(not_mask.astype(jnp.float32), axis=2)
    x_embed = jnp.cumsum(not_mask.astype(jnp.float32), axis=3)
    if normalize:
        eps = 1e-06
        z_embed = z_embed / (z_embed[:, -1:, :, :] + eps) * scale
        y_embed = y_embed / (y_embed[:, :, -1:, :] + eps) * scale
        x_embed = x_embed / (x_embed[:, :, :, -1:] + eps) * scale

    dim_t = jnp.arange(num_pos_feats, dtype=jnp.float32)
    dim_t = temperature ** (2 * (dim_t // 2) / num_pos_feats)
    dim_t_z = jnp.arange(num_pos_feats * 2, dtype=jnp.float32)
    dim_t_z = temperature ** (2 * (dim_t_z // 2) / (num_pos_feats * 2))

    pos_x = x_embed[..., None] / dim_t
    pos_y = y_embed[..., None] / dim_t
    pos_z = z_embed[..., None] / dim_t_z

    def interleave(p):
        return jnp.stack(
            (jnp.sin(p[..., 0::2]), jnp.cos(p[..., 1::2])), axis=5
        ).reshape(p.shape[:4] + (-1,))

    pos_x = interleave(pos_x)
    pos_y = interleave(pos_y)
    pos_z = interleave(pos_z)
    if not add_temporal:
        pos_z = 0.0
    pos = jnp.concatenate((pos_y, pos_x), axis=4) + pos_z
    return jnp.transpose(pos, (0, 1, 4, 2, 3))


if __name__ == "__main__":
    key = jax.random.PRNGKey(0)
    B, T, Cin, H, W = 2, 4, 3, 16, 16
    num_pos_feats = 32

    x = jax.random.normal(key, (B, T, Cin, H, W), dtype=jnp.float32)

    # 1) default config (mask=None fast path, add_temporal=True)
    out = position_embedding_sine_3d(x, num_pos_feats=num_pos_feats)
    out = jax.block_until_ready(out)
    ref = _reference(x, num_pos_feats=num_pos_feats)
    assert out.shape == (B, T, 2 * num_pos_feats, H, W), out.shape
    assert out.dtype == jnp.float32
    assert jnp.allclose(out, ref, rtol=1e-5, atol=1e-5), \
        float(jnp.max(jnp.abs(out - ref)))

    # 2) normalize=True with a non-trivial (spatially varying) mask
    col = jnp.arange(W)
    mask = jnp.broadcast_to(col[None, None, None, :] >= W - 3, (B, T, H, W))
    out2 = position_embedding_sine_3d(
        x, mask, num_pos_feats=num_pos_feats, normalize=True)
    out2 = jax.block_until_ready(out2)
    ref2 = _reference(x, mask, num_pos_feats=num_pos_feats, normalize=True)
    assert jnp.allclose(out2, ref2, rtol=1e-5, atol=1e-5), \
        float(jnp.max(jnp.abs(out2 - ref2)))

    # 3) add_temporal=False path (fast path without the z input)
    out3 = position_embedding_sine_3d(
        x, num_pos_feats=num_pos_feats, add_temporal=False)
    out3 = jax.block_until_ready(out3)
    ref3 = _reference(x, num_pos_feats=num_pos_feats, add_temporal=False)
    assert jnp.allclose(out3, ref3, rtol=1e-5, atol=1e-5), \
        float(jnp.max(jnp.abs(out3 - ref3)))

    print("KERNEL_OK")
</pallas_src>

<mosaic_0001>
module attributes {stable_mosaic.version = 11 : i64} {
  func.func @_pos_kernel_fast(%arg0: i32, %arg1: i32, %arg2: memref<64x4xf32, #tpu.memory_space<vmem>>, %arg3: memref<2x256xf32, #tpu.memory_space<vmem>>, %arg4: memref<1x1x1xf32, #tpu.memory_space<vmem>>, %arg5: memref<1x64x256xf32, #tpu.memory_space<vmem>>) attributes {dimension_semantics = [#tpu.dimension_semantics<parallel>, #tpu.dimension_semantics<parallel>], iteration_bounds = array<i64: 8, 1>, scalar_prefetch = 0 : i64, scratch_operands = 0 : i64, tpu.core_type = #tpu.core_type<tc>, window_params = [{pipeline_mode = #tpu.pipeline_mode<synchronous>, transform_indices = @transform_0, window_bounds = array<i64: 64, 4>}, {transform_indices = @transform_1, window_bounds = array<i64: 2, 256>}, {transform_indices = @transform_2, window_bounds = array<i64: 1, 1, 1>}, {transform_indices = @transform_3, window_bounds = array<i64: 1, 64, 256>}]} {
    %c0 = arith.constant 0 : index
    %c0_0 = arith.constant 0 : index
    %0 = vector.load %arg2[%c0, %c0_0] : memref<64x4xf32, #tpu.memory_space<vmem>>, vector<32x1xf32>
    %1 = vector.shape_cast %0 : vector<32x1xf32> to vector<1x32x1xf32>
    %c0_1 = arith.constant 0 : index
    %c1 = arith.constant 1 : index
    %2 = vector.load %arg2[%c0_1, %c1] : memref<64x4xf32, #tpu.memory_space<vmem>>, vector<32x1xf32>
    %3 = vector.shape_cast %2 : vector<32x1xf32> to vector<1x32x1xf32>
    %c0_2 = arith.constant 0 : index
    %c0_3 = arith.constant 0 : index
    %c0_4 = arith.constant 0 : index
    %4 = vector.load %arg4[%c0_2, %c0_3, %c0_4] : memref<1x1x1xf32, #tpu.memory_space<vmem>>, vector<1x1x1xf32>
    %c0_5 = arith.constant 0 : index
    %c2 = arith.constant 2 : index
    %5 = vector.load %arg2[%c0_5, %c2] : memref<64x4xf32, #tpu.memory_space<vmem>>, vector<64x1xf32>
    %6 = vector.shape_cast %5 : vector<64x1xf32> to vector<1x64x1xf32>
    %7 = vector.broadcast %4 : vector<1x1x1xf32> to vector<1x64x1xf32>
    %8 = arith.mulf %7, %6 : vector<1x64x1xf32>
    %c0_6 = arith.constant 0 : index
    %c3 = arith.constant 3 : index
    %9 = vector.load %arg2[%c0_6, %c3] : memref<64x4xf32, #tpu.memory_space<vmem>>, vector<64x1xf32>
    %10 = vector.shape_cast %9 : vector<64x1xf32> to vector<1x64x1xf32>
    %11 = arith.addf %8, %10 : vector<1x64x1xf32>
    %12 = math.sin %11 : vector<1x64x1xf32>
    %c0_7 = arith.constant 0 : index
    %c0_8 = arith.constant 0 : index
    %13 = vector.load %arg3[%c0_7, %c0_8] : memref<2x256xf32, #tpu.memory_space<vmem>>, vector<1x256xf32>
    %14 = vector.shape_cast %13 : vector<1x256xf32> to vector<1x1x256xf32>
    %15 = vector.broadcast %14 : vector<1x1x256xf32> to vector<1x32x256xf32>
    %16 = vector.broadcast %1 : vector<1x32x1xf32> to vector<1x32x256xf32>
    %17 = arith.mulf %15, %16 : vector<1x32x256xf32>
    %18 = vector.broadcast %3 : vector<1x32x1xf32> to vector<1x32x256xf32>
    %19 = arith.addf %17, %18 : vector<1x32x256xf32>
    %20 = math.sin %19 : vector<1x32x256xf32>
    %21 = vector.extract_strided_slice %12 {offsets = [0, 0, 0], sizes = [1, 32, 1], strides = [1, 1, 1]} : vector<1x64x1xf32> to vector<1x32x1xf32>
    %22 = vector.broadcast %21 : vector<1x32x1xf32> to vector<1x32x256xf32>
    %23 = arith.addf %20, %22 : vector<1x32x256xf32>
    %c0_9 = arith.constant 0 : index
    %c0_10 = arith.constant 0 : index
    %c0_11 = arith.constant 0 : index
    %24 = vector.load %arg5[%c0_9, %c0_10, %c0_11] : memref<1x64x256xf32, #tpu.memory_space<vmem>>, vector<1x32x256xf32>
    tpu.vector_store %arg5[%c0_9, %c0_10, %c0_11], %23 {strides = array<i32>} : memref<1x64x256xf32, #tpu.memory_space<vmem>>, vector<1x32x256xf32>,
    %c1_12 = arith.constant 1 : index
    %c0_13 = arith.constant 0 : index
    %25 = vector.load %arg3[%c1_12, %c0_13] : memref<2x256xf32, #tpu.memory_space<vmem>>, vector<1x256xf32>
    %26 = vector.shape_cast %25 : vector<1x256xf32> to vector<1x1x256xf32>
    %27 = vector.broadcast %26 : vector<1x1x256xf32> to vector<1x32x256xf32>
    %28 = vector.broadcast %1 : vector<1x32x1xf32> to vector<1x32x256xf32>
    %29 = arith.mulf %27, %28 : vector<1x32x256xf32>
    %30 = vector.broadcast %3 : vector<1x32x1xf32> to vector<1x32x256xf32>
    %31 = arith.addf %29, %30 : vector<1x32x256xf32>
    %32 = math.sin %31 : vector<1x32x256xf32>
    %33 = vector.extract_strided_slice %12 {offsets = [0, 32, 0], sizes = [1, 32, 1], strides = [1, 1, 1]} : vector<1x64x1xf32> to vector<1x32x1xf32>
    %34 = vector.broadcast %33 : vector<1x32x1xf32> to vector<1x32x256xf32>
    %35 = arith.addf %32, %34 : vector<1x32x256xf32>
    %c0_14 = arith.constant 0 : index
    %c32 = arith.constant 32 : index
    %c0_15 = arith.constant 0 : index
    %36 = vector.load %arg5[%c0_14, %c32, %c0_15] : memref<1x64x256xf32, #tpu.memory_space<vmem>>, vector<1x32x256xf32>
    tpu.vector_store %arg5[%c0_14, %c32, %c0_15], %35 {strides = array<i32>} : memref<1x64x256xf32, #tpu.memory_space<vmem>>, vector<1x32x256xf32>,
    return
  }
  func.func @transform_0(%arg0: i32, %arg1: i32) -> (i32, i32) {
    %c0_i32 = arith.constant 0 : i32
    %c0_i32_0 = arith.constant 0 : i32
    %c0_i32_1 = arith.constant 0 : i32
    return %c0_i32, %c0_i32_0 : i32, i32
  }
  func.func @transform_1(%arg0: i32, %arg1: i32) -> (i32, i32) {
    %c0_i32 = arith.constant 0 : i32
    %c0_i32_0 = arith.constant 0 : i32
    return %c0_i32, %arg1 : i32, i32
  }
  func.func @transform_2(%arg0: i32, %arg1: i32) -> (i32, i32, i32) {
    %c0_i32 = arith.constant 0 : i32
    %c0_i32_0 = arith.constant 0 : i32
    %c0_i32_1 = arith.constant 0 : i32
    return %arg0, %c0_i32, %c0_i32_0 : i32, i32, i32
  }
  func.func @transform_3(%arg0: i32, %arg1: i32) -> (i32, i32, i32) {
    %c0_i32 = arith.constant 0 : i32
    %c0_i32_0 = arith.constant 0 : i32
    return %arg0, %c0_i32, %arg1 : i32, i32, i32
  }
}

</mosaic_0001>

<llo_original>
// kernel: tpu_custom_call.1
$region0: #{tpu_custom_call.1}
  #allocation0 [shape = 'u32[]', space=smem, size = 0x4, offset = 0x4, fixed_abs, tag = 'smem constant byte address 0x4 - core index']
  #allocation1 [shape = 'u32[144,128]{1,0:T(1,128)}', space=vmem, size = 0x12000, scoped, tag = 'internal scratch']
  %s0 = inlined_call_operand.vmem [shape: f32[64,4], index: 0, kind: input, shape index: {}]
  %s1 = inlined_call_operand.vmem [shape: f32[2,256], index: 1, kind: input, shape index: {}]
  %s2 = inlined_call_operand.vmem [shape: f32[8,1,1], index: 2, kind: input, shape index: {}]
  %s3 = inlined_call_operand.hbm [shape: f32[8,64,256], index: 3, kind: output, shape index: {}]
  %s4 = sld [smem:[#allocation0]]
  $region45: #{tpu_custom_call.1} parent=0
    _
  %s6 = ssub.s32 1, %s4
  %s7 = scalar_select 0, %s6, %s4
  $region1: #{tpu_custom_call.1} parent=0
    #allocation2 [shape = 'u8[131072]{0}', space=vmem, size = 0x20000, scoped, tag = 'output window, operand 0']
    #allocation3 [shape = 's32[2]{0}', space=sflag, size = 0x8, scoped, tag = 'scoped memory for tpu_custom_call.1']
    %8 = vsyncpa [#allocation3], 0
    %s9 = scalar_lea.sflag [#allocation3], 1
    %10 = vsyncpa %s9, 0
    loop: start=0, step=1, limit=10
    $region2: #{tpu_custom_call.1} parent=1 // loop_pre_header
      _
    $region3: #{tpu_custom_call.1} parent=1 // loop_header
      %s12 = sphi 0, %s16
      %p13 = scmp.ge.s32.totalorder %s12, 10
      %s19 = sphi 0, %s31
      %s20 = sphi 0, %s27
      %s21 = sphi 0, %s19
      %s22 = sphi 0, %s20
      %s23 = sphi 0, %s21
      %s24 = sphi 0, %s22
      %s32 = sphi 0, %s32
      %s34 = sphi 0, %s32
      %s35 = sphi 0, %s34
      %s49 = sphi 0, %s35
      %s55 = sphi 0, %s57
      %s58 = sphi 0, %s55
      %s59 = sphi 0, %s58
      %s75 = sphi 0, %s59
      %s81 = sphi 0, %s83
      %s84 = sphi 0, %s81
      %s85 = sphi 0, %s84
      %s101 = sphi 0, %s85
      %s109 = sphi 0, %s111
      %s112 = sphi 0, %s109
      %s113 = sphi 0, %s112
      %s129 = sphi 0, %s113
    $region4: #{tpu_custom_call.1} parent=1 // loop_header_branch
      %15 = sbr.rel (%p13) target = $region8
    $region5: #{tpu_custom_call.1} parent=1 // loop_body
      %s17 = ssub.s32 %s12, 1
      %s18 = ssub.s32 %s12, 2
      %s25 = sadd.s32 1, %s20
      %p26 = scmp.ge.s32.totalorder %s25, 1
      %s27 = scalar_select %p26, 0, %s25
      %s28 = sadd.s32 1, %s19
      %s29 = scalar_select %p26, %s28, %s19
      %p30 = scmp.ge.s32.totalorder %s29, 8
      %s31 = scalar_select %p30, 0, %s29
      %s33 = sadd.s32 %s32, 1
      %p36 = scmp.eq.s32.totalorder %s12, 7
      %p37 = scmp.ne.s32.totalorder %s32, %s34
      %p38 = scmp.eq.s32.totalorder %s12, 0
      %p39 = por %p37, %p38
      %p40 = scmp.ne.s32.totalorder %s32, %s34
      %p41 = scmp.eq.s32.totalorder %s17, 7
      %p42 = por %p40, %p41
      %p43 = scmp.ne.s32.totalorder %s34, %s35
      %p44 = scmp.eq.s32.totalorder %s17, 0
      %p45 = por %p43, %p44
      %p46 = scmp.ne.s32.totalorder %s34, %s35
      %p47 = scmp.eq.s32.totalorder %s18, 7
      %p48 = por %p46, %p47
      %p50 = scmp.ne.s32.totalorder %s35, %s49
      %p51 = scmp.eq.s32.totalorder %s18, 0
      %p52 = por %p50, %p51
      %s53 = ssub.s32 %s20, %s27
      %p54 = scmp.eq.s32.totalorder %s53, 0
      %s56 = sadd.s32 %s55, 1
      %s57 = scalar_select %p54, %s55, %s56
      %p60 = pneg %p54
      %p61 = scmp.eq.s32.totalorder %s12, 7
      %p62 = por %p60, %p61
      %p63 = scmp.ne.s32.totalorder %s55, %s58
      %p64 = scmp.eq.s32.totalorder %s12, 0
      %p65 = por %p63, %p64
      %p66 = scmp.ne.s32.totalorder %s55, %s58
      %p67 = scmp.eq.s32.totalorder %s17, 7
      %p68 = por %p66, %p67
      %p69 = scmp.ne.s32.totalorder %s58, %s59
      %p70 = scmp.eq.s32.totalorder %s17, 0
      %p71 = por %p69, %p70
      %p72 = scmp.ne.s32.totalorder %s58, %s59
      %p73 = scmp.eq.s32.totalorder %s18, 7
      %p74 = por %p72, %p73
      %p76 = scmp.ne.s32.totalorder %s59, %s75
      %p77 = scmp.eq.s32.totalorder %s18, 0
      %p78 = por %p76, %p77
      %s79 = ssub.s32 %s19, %s31
      %p80 = scmp.eq.s32.totalorder %s79, 0
      %s82 = sadd.s32 %s81, 1
      %s83 = scalar_select %p80, %s81, %s82
      %p86 = pneg %p80
      %p87 = scmp.eq.s32.totalorder %s12, 7
      %p88 = por %p86, %p87
      %p89 = scmp.ne.s32.totalorder %s81, %s84
      %p90 = scmp.eq.s32.totalorder %s12, 0
      %p91 = por %p89, %p90
      %p92 = scmp.ne.s32.totalorder %s81, %s84
      %p93 = scmp.eq.s32.totalorder %s17, 7
      %p94 = por %p92, %p93
      %p95 = scmp.ne.s32.totalorder %s84, %s85
      %p96 = scmp.eq.s32.totalorder %s17, 0
      %p97 = por %p95, %p96
      %p98 = scmp.ne.s32.totalorder %s84, %s85
      %p99 = scmp.eq.s32.totalorder %s18, 7
      %p100 = por %p98, %p99
      %p102 = scmp.ne.s32.totalorder %s85, %s101
      %p103 = scmp.eq.s32.totalorder %s18, 0
      %p104 = por %p102, %p103
      %s105 = ssub.s32 %s19, %s31
      %s106 = ssub.s32 %s20, %s27
      %s107 = sor.u32 %s105, %s106
      %p108 = scmp.eq.s32.totalorder %s107, 0
      %s110 = sadd.s32 %s109, 1
      %s111 = scalar_select %p108, %s109, %s110
      %p114 = pneg %p108
      %p115 = scmp.eq.s32.totalorder %s12, 7
      %p116 = por %p114, %p115
      %p117 = scmp.ne.s32.totalorder %s109, %s112
      %p118 = scmp.eq.s32.totalorder %s12, 0
      %p119 = por %p117, %p118
      %p120 = scmp.ne.s32.totalorder %s109, %s112
      %p121 = scmp.eq.s32.totalorder %s17, 7
      %p122 = por %p120, %p121
      %p123 = scmp.ne.s32.totalorder %s112, %s113
      %p124 = scmp.eq.s32.totalorder %s17, 0
      %p125 = por %p123, %p124
      %p126 = scmp.ne.s32.totalorder %s112, %s113
      %p127 = scmp.eq.s32.totalorder %s18, 7
      %p128 = por %p126, %p127
      %p130 = scmp.ne.s32.totalorder %s113, %s129
      %p131 = scmp.eq.s32.totalorder %s18, 0
      %p132 = por %p130, %p131
      %p133 = scmp.le.s32.totalorder 1, %s12
      %p134 = scmp.lt.s32.totalorder %s12, 9
      %p135 = pnand %p133, %p134
      %p136 = pneg %p135
      // Predicated region
      $region9: #{tpu_custom_call.1} parent=5 // pred_check
        _
      $region10: #{tpu_custom_call.1} parent=5 // pred_check_branch
        %138 = sbr.rel (%p135) target = $region12
      $region11: #{tpu_custom_call.1} parent=5 // pred_region
        %s139 = ssub.s32 %s12, 1
        // Predicated region
        $region13: #{tpu_custom_call.1} parent=11 // pred_check
          %p140 = pneg %p45
        $region14: #{tpu_custom_call.1} parent=11 // pred_check_branch
          %142 = sbr.rel (%p140) target = $region16
        $region15: #{tpu_custom_call.1} parent=11 // pred_region
          _
        $region16: #{tpu_custom_call.1} parent=11 // pred_fallthru
          _
        // Predicated region
        $region17: #{tpu_custom_call.1} parent=11 // pred_check
          %p143 = pneg %p71
        $region18: #{tpu_custom_call.1} parent=11 // pred_check_branch
          %145 = sbr.rel (%p143) target = $region20
        $region19: #{tpu_custom_call.1} parent=11 // pred_region
          %s146 = smul.u32 2, %s22
          %p147 = scmp.lt.s32.totalorder %s146, 1
          %s148 = scalar_select %p147, %s146, 1
          %s149 = smul.addr %s148, 2
          %s150 = scalar_lea.vmem %s1, %s149
          %s151 = smul.u32 2, %s22
        $region20: #{tpu_custom_call.1} parent=11 // pred_fallthru
          _
      $region12: #{tpu_custom_call.1} parent=5 // pred_fallthru
        _
      %p152 = scmp.lt.s32.totalorder %s12, 8
      // Predicated region
      $region21: #{tpu_custom_call.1} parent=5 // pred_check
        %p153 = pneg %p152
      $region22: #{tpu_custom_call.1} parent=5 // pred_check_branch
        %155 = sbr.rel (%p153) target = $region24
      $region23: #{tpu_custom_call.1} parent=5 // pred_region
        // Predicated region
        $region25: #{tpu_custom_call.1} parent=23 // pred_check
          %p156 = pneg %p91
        $region26: #{tpu_custom_call.1} parent=23 // pred_check_branch
          %158 = sbr.rel (%p156) target = $region28
        $region27: #{tpu_custom_call.1} parent=23 // pred_region
          %p159 = scmp.lt.s32.totalorder %s19, 7
          %s160 = scalar_select %p159, %s19, 7
          %s161 = scalar_lea.vmem %s2, %s160
        $region28: #{tpu_custom_call.1} parent=23 // pred_fallthru
          _
      $region24: #{tpu_custom_call.1} parent=5 // pred_fallthru
        _
      %p162 = scmp.le.s32.totalorder 1, %s12
      %p163 = scmp.lt.s32.totalorder %s12, 9
      %p164 = pnand %p162, %p163
      %p165 = pneg %p164
      // Predicated region
      $region29: #{tpu_custom_call.1} parent=5 // pred_check
        _
      $region30: #{tpu_custom_call.1} parent=5 // pred_check_branch
        %167 = sbr.rel (%p164) target = $region32
      $region31: #{tpu_custom_call.1} parent=5 // pred_region
        %s168 = ssub.s32 %s12, 1
        %p169 = pneg %p45
        %p170 = pneg %p42
        %s171 = smul.u32 2, %s22
        %p172 = scmp.lt.s32.totalorder %s171, 1
        %s173 = scalar_select %p172, %s171, 1
        %s174 = smul.addr %s173, 2
        %s175 = scalar_lea.vmem %s1, %s174
        %p176 = pneg %p71
        %p177 = pneg %p68
        %p178 = scmp.lt.s32.totalorder %s21, 7
        %s179 = scalar_select %p178, %s21, 7
        %s180 = scalar_lea.vmem %s2, %s179
        %p181 = pneg %p97
        %p182 = pneg %p94
        %p183 = pneg %p125
        %p184 = pneg %p122
        %s185 = sand.u32 %s112, 1
        %s186 = scalar_lea.sflag [#allocation3], %s185
        %s187 = sand.u32 %s112, 1
        %s188 = smul.addr %s187, 128
        %s189 = scalar_lea.vmem [#allocation2], %s188
        %s190 = smul.u32 2, %s22
        %p191 = scmp.lt.s32.totalorder %s190, 1
        %s192 = scalar_select %p191, %s190, 1
        %s193 = smul.addr %s192, 2
        %s194 = scalar_lea.vmem %s1, %s193
        %s195 = smul.u32 2, %s22
        %p196 = scmp.lt.s32.totalorder %s21, 7
        %s197 = scalar_select %p196, %s21, 7
        %s198 = scalar_lea.vmem %s2, %s197
        %s199 = smul.u32 2, %s22
        %v200 = vld [vmem:[%s0] sm:$0xff]
        %v201 = vld [vmem:[%s0 + $0x8] sm:$0xff]
        %v202 = vld [vmem:[%s0 + $0x10] sm:$0xff]
        %v203 = vld [vmem:[%s0 + $0x18] sm:$0xff]
        %v204 = vld [vmem:[%s198] sm:$0x1]
        %v205 = vld [vmem:[%s0 + $0x20] sm:$0xff]
        %v206 = vld [vmem:[%s0 + $0x28] sm:$0xff]
        %v207 = vld [vmem:[%s0 + $0x30] sm:$0xff]
        %v208 = vld [vmem:[%s0 + $0x38] sm:$0xff]
        %v210 = vlaneseq
        %v211 = vshrl.u32 %v210, 7
        %v212 = vsub.s32 0, %v211
        %v213 = vrot.slane %v204, %v212
        %223 = vrot.lane.b32.xlu0 %v200, 126
        %v224 = vpop.permute.xlu0 %223
        %225 = vrot.lane.b32.xlu0 %v201, 126
        %v226 = vpop.permute.xlu0 %225
        %227 = vrot.lane.b32.xlu0 %v202, 126
        %v228 = vpop.permute.xlu0 %227
        %229 = vrot.lane.b32.xlu0 %v203, 126
        %v230 = vpop.permute.xlu0 %229
        %231 = vrot.lane.b32.xlu0 %v205, 126
        %v232 = vpop.permute.xlu0 %231
        %233 = vrot.lane.b32.xlu0 %v206, 126
        %v234 = vpop.permute.xlu0 %233
        %235 = vrot.lane.b32.xlu0 %v207, 126
        %v236 = vpop.permute.xlu0 %235
        %237 = vrot.lane.b32.xlu0 %v208, 126
        %v238 = vpop.permute.xlu0 %237
        %v247 = vmul.f32 %v213, %v224
        %v248 = vmul.f32 %v213, %v226
        %v249 = vmul.f32 %v213, %v228
        %v250 = vmul.f32 %v213, %v230
        %v251 = vmul.f32 %v213, %v232
        %v252 = vmul.f32 %v213, %v234
        %v253 = vmul.f32 %v213, %v236
        %v254 = vmul.f32 %v213, %v238
        %255 = vrot.lane.b32.xlu0 %v200, 125
        %v256 = vpop.permute.xlu0 %255
        %257 = vrot.lane.b32.xlu0 %v201, 125
        %v258 = vpop.permute.xlu0 %257
        %259 = vrot.lane.b32.xlu0 %v202, 125
        %v260 = vpop.permute.xlu0 %259
        %261 = vrot.lane.b32.xlu0 %v203, 125
        %v262 = vpop.permute.xlu0 %261
        %263 = vrot.lane.b32.xlu0 %v205, 125
        %v264 = vpop.permute.xlu0 %263
        %265 = vrot.lane.b32.xlu0 %v206, 125
        %v266 = vpop.permute.xlu0 %265
        %267 = vrot.lane.b32.xlu0 %v207, 125
        %v268 = vpop.permute.xlu0 %267
        %269 = vrot.lane.b32.xlu0 %v208, 125
        %v270 = vpop.permute.xlu0 %269
        %v279 = vadd.f32 %v247, %v256
        %v280 = vadd.f32 %v248, %v258
        %v281 = vadd.f32 %v249, %v260
        %v282 = vadd.f32 %v250, %v262
        %v283 = vadd.f32 %v251, %v264
        %v284 = vadd.f32 %v252, %v266
        %v285 = vadd.f32 %v253, %v268
        %v286 = vadd.f32 %v254, %v270
        %v287 = vand.u32 2147483647, %v279
        %vm288 = vcmp.le.f32.partialorder %v287, 0.7853982
        %vm289 = vcmp.lt.s32.totalorder %v279, 0
        %v290 = vand.u32 %v279, 2139095040
        %v291 = vshrl.u32 %v290, 23
        %v292 = vsub.s32 %v291, 127
        %v293 = vand.u32 2147483647, %v279
        %v294 = vand.u32 %v293, 8388607
        %v295 = vor.u32 %v294, 8388608
        %v296 = vsub.s32 0, %v295
        %v297 = vadd.s32 %v292, 1
        %vm298 = vcmp.gt.s32.totalorder %v297, 0
        %v299 = vsel %vm298, %v297, 0
        %v300 = vshrl.u32 %v299, 5
        %v301 = vand.u32 %v299, 31
        %v302 = vsub.s32 32, %v301
        %v303 = vshrl.u32 683565275, %v302
        %v304 = vshll.u32 683565275, %v301
        %v305 = vshrl.u32 2475754826, %v302
        %v306 = vor.u32 %v304, %v305
        %v307 = vshll.u32 2475754826, %v301
        %v308 = vshrl.u32 2131351028, %v302
        %v309 = vor.u32 %v307, %v308
        %v310 = vshll.u32 2131351028, %v301
        %v311 = vshrl.u32 2102212464, %v302
        %v312 = vor.u32 %v310, %v311
        %v313 = vshll.u32 2102212464, %v301
        %v314 = vshrl.u32 920167782, %v302
        %v315 = vor.u32 %v313, %v314
        %v316 = vshll.u32 920167782, %v301
        %v317 = vshrl.u32 1326507024, %v302
        %v318 = vor.u32 %v316, %v317
        %vm319 = vcmp.lt.s32.totalorder %v300, 1
        %vm320 = vcmp.lt.s32.totalorder %v300, 2
        %vm321 = vcmp.lt.s32.totalorder %v300, 3
        %vm322 = vcmp.lt.s32.totalorder %v300, 4
        %v323 = vsel %vm319, %v303, %v306
        %v324 = vsel %vm322, %v312, 2102212464
        %v325 = vsel %vm321, %v309, %v324
        %v326 = vsel %vm320, %v323, %v325
        %v327 = vsel %vm319, %v306, %v309
        %v328 = vsel %vm322, %v315, 920167782
        %v329 = vsel %vm321, %v312, %v328
        %v330 = vsel %vm320, %v327, %v329
        %v331 = vsel %vm319, %v309, %v312
        %v332 = vsel %vm322, %v318, 1326507024
        %v333 = vsel %vm321, %v315, %v332
        %v334 = vsel %vm320, %v331, %v333
        %v335 = vshll.u32 %v295, 8
        %v336 = vmul.u32.u64.compose %v335, %v334
        %v337 = vextract.low.u32 %v336
        %v338 = vextract.high.u32 %v336
        %v339 = vmul.u32.u64.compose %v335, %v330
        %v340 = vextract.low.u32 %v339
        %v341 = vextract.high.u32 %v339
        %v342 = vmul.u32 %v335, %v326
        %v343 = vadd.s32 %v338, %v340
        %vm344 = vc.u32 %v338, %v340
        %v345 = vadd.s32 %v341, 1
        %v346 = vsel %vm344, %v345, %v341
        %v347 = vadd.s32 %v342, %v346
        %v348 = vadd.s32 %v347, 536870912
        %v349 = vshrl.u32 %v348, 30
        %v350 = vshll.u32 %v349, 30
        %v351 = vsub.s32 %v347, %v350
        %vm352 = vcmp.lt.s32.totalorder %v351, 0
        %v353 = vsub.s32 0, %v351
        %v354 = vsel %vm352, %v353, %v351
        %v355 = vclz %v354
        %v356 = vsub.s32 %v355, 2
        %vm357 = vcmp.gt.s32.totalorder 0, %v356
        %v358 = vsel %vm357, 0, %v356
        %v359 = vsub.s32 32, %v358
        %v360 = vshll.u32 %v351, %v358
        %v361 = vshrl.u32 %v343, %v359
        %v362 = vor.u32 %v360, %v361
        %v363 = vsub.s32 4294967266, %v358
        %v364 = vadd.s32 %v363, 127
        %v365 = vshll.u32 %v364, 23
        %v366 = vor.u32 4788187, %v365
        %v367 = vand.u32 2147483647, %v366
        %v369 = vcvt.s32.f32 %v362
        %v370 = vmul.f32 %v369, %v367
        %v371 = vxor.u32 %v370, 2147483648
        %v372 = vsel %vm289, %v371, %v370
        %v373 = vsub.s32 4, %v349
        %v374 = vsel %vm289, %v373, %v349
        %v375 = vsel %vm288, %v279, %v372
        %v376 = vsel %vm288, 0, %v374
        %v377 = vcosq.f32.pop %v375
        %v378 = vsinq.f32.pop %v375
        %vm379 = vweird.f32 %v279
        %v380 = vadd.s32 %v376, 3
        %v381 = vand.u32 %v380, 3
        %vm382 = vcmp.lt.s32.totalorder %v381, 2
        %vm383 = vcmp.eq.s32.totalorder %v381, 0
        %v384 = vxor.u32 %v378, 2147483648
        %v385 = vsel %vm383, %v377, %v384
        %vm386 = vcmp.eq.s32.totalorder %v381, 2
        %v387 = vxor.u32 %v377, 2147483648
        %v388 = vsel %vm386, %v387, %v378
        %v389 = vsel %vm382, %v385, %v388
        %v390 = vsel %vm379, nan, %v389
        %v391 = vand.u32 2147483647, %v280
        %vm392 = vcmp.le.f32.partialorder %v391, 0.7853982
        %vm393 = vcmp.lt.s32.totalorder %v280, 0
        %v394 = vand.u32 %v280, 2139095040
        %v395 = vshrl.u32 %v394, 23
        %v396 = vsub.s32 %v395, 127
        %v397 = vand.u32 2147483647, %v280
        %v398 = vand.u32 %v397, 8388607
        %v399 = vor.u32 %v398, 8388608
        %v400 = vsub.s32 0, %v399
        %v401 = vadd.s32 %v396, 1
        %vm402 = vcmp.gt.s32.totalorder %v401, 0
        %v403 = vsel %vm402, %v401, 0
        %v404 = vshrl.u32 %v403, 5
        %v405 = vand.u32 %v403, 31
        %v406 = vsub.s32 32, %v405
        %v407 = vshrl.u32 683565275, %v406
        %v408 = vshll.u32 683565275, %v405
        %v409 = vshrl.u32 2475754826, %v406
        %v410 = vor.u32 %v408, %v409
        %v411 = vshll.u32 2475754826, %v405
        %v412 = vshrl.u32 2131351028, %v406
        %v413 = vor.u32 %v411, %v412
        %v414 = vshll.u32 2131351028, %v405
        %v415 = vshrl.u32 2102212464, %v406
        %v416 = vor.u32 %v414, %v415
        %v417 = vshll.u32 2102212464, %v405
        %v418 = vshrl.u32 920167782, %v406
        %v419 = vor.u32 %v417, %v418
        %v420 = vshll.u32 920167782, %v405
        %v421 = vshrl.u32 1326507024, %v406
        %v422 = vor.u32 %v420, %v421
        %vm423 = vcmp.lt.s32.totalorder %v404, 1
        %vm424 = vcmp.lt.s32.totalorder %v404, 2
        %vm425 = vcmp.lt.s32.totalorder %v404, 3
        %vm426 = vcmp.lt.s32.totalorder %v404, 4
        %v427 = vsel %vm423, %v407, %v410
        %v428 = vsel %vm426, %v416, 2102212464
        %v429 = vsel %vm425, %v413, %v428
        %v430 = vsel %vm424, %v427, %v429
        %v431 = vsel %vm423, %v410, %v413
        %v432 = vsel %vm426, %v419, 920167782
        %v433 = vsel %vm425, %v416, %v432
        %v434 = vsel %vm424, %v431, %v433
        %v435 = vsel %vm423, %v413, %v416
        %v436 = vsel %vm426, %v422, 1326507024
        %v437 = vsel %vm425, %v419, %v436
        %v438 = vsel %vm424, %v435, %v437
        %v439 = vshll.u32 %v399, 8
        %v440 = vmul.u32.u64.compose %v439, %v438
        %v441 = vextract.low.u32 %v440
        %v442 = vextract.high.u32 %v440
        %v443 = vmul.u32.u64.compose %v439, %v434
        %v444 = vextract.low.u32 %v443
        %v445 = vextract.high.u32 %v443
        %v446 = vmul.u32 %v439, %v430
        %v447 = vadd.s32 %v442, %v444
        %vm448 = vc.u32 %v442, %v444
        %v449 = vadd.s32 %v445, 1
        %v450 = vsel %vm448, %v449, %v445
        %v451 = vadd.s32 %v446, %v450
        %v452 = vadd.s32 %v451, 536870912
        %v453 = vshrl.u32 %v452, 30
        %v454 = vshll.u32 %v453, 30
        %v455 = vsub.s32 %v451, %v454
        %vm456 = vcmp.lt.s32.totalorder %v455, 0
        %v457 = vsub.s32 0, %v455
        %v458 = vsel %vm456, %v457, %v455
        %v459 = vclz %v458
        %v460 = vsub.s32 %v459, 2
        %vm461 = vcmp.gt.s32.totalorder 0, %v460
        %v462 = vsel %vm461, 0, %v460
        %v463 = vsub.s32 32, %v462
        %v464 = vshll.u32 %v455, %v462
        %v465 = vshrl.u32 %v447, %v463
        %v466 = vor.u32 %v464, %v465
        %v467 = vsub.s32 4294967266, %v462
        %v468 = vadd.s32 %v467, 127
        %v469 = vshll.u32 %v468, 23
        %v470 = vor.u32 4788187, %v469
        %v471 = vand.u32 2147483647, %v470
        %v473 = vcvt.s32.f32 %v466
        %v474 = vmul.f32 %v473, %v471
        %v475 = vxor.u32 %v474, 2147483648
        %v476 = vsel %vm393, %v475, %v474
        %v477 = vsub.s32 4, %v453
        %v478 = vsel %vm393, %v477, %v453
        %v479 = vsel %vm392, %v280, %v476
        %v480 = vsel %vm392, 0, %v478
        %v481 = vcosq.f32.pop %v479
        %v482 = vsinq.f32.pop %v479
        %vm483 = vweird.f32 %v280
        %v484 = vadd.s32 %v480, 3
        %v485 = vand.u32 %v484, 3
        %vm486 = vcmp.lt.s32.totalorder %v485, 2
        %vm487 = vcmp.eq.s32.totalorder %v485, 0
        %v488 = vxor.u32 %v482, 2147483648
        %v489 = vsel %vm487, %v481, %v488
        %vm490 = vcmp.eq.s32.totalorder %v485, 2
        %v491 = vxor.u32 %v481, 2147483648
        %v492 = vsel %vm490, %v491, %v482
        %v493 = vsel %vm486, %v489, %v492
        %v494 = vsel %vm483, nan, %v493
        %v495 = vand.u32 2147483647, %v281
        %vm496 = vcmp.le.f32.partialorder %v495, 0.7853982
        %vm497 = vcmp.lt.s32.totalorder %v281, 0
        %v498 = vand.u32 %v281, 2139095040
        %v499 = vshrl.u32 %v498, 23
        %v500 = vsub.s32 %v499, 127
        %v501 = vand.u32 2147483647, %v281
        %v502 = vand.u32 %v501, 8388607
        %v503 = vor.u32 %v502, 8388608
        %v504 = vsub.s32 0, %v503
        %v505 = vadd.s32 %v500, 1
        %vm506 = vcmp.gt.s32.totalorder %v505, 0
        %v507 = vsel %vm506, %v505, 0
        %v508 = vshrl.u32 %v507, 5
        %v509 = vand.u32 %v507, 31
        %v510 = vsub.s32 32, %v509
        %v511 = vshrl.u32 683565275, %v510
        %v512 = vshll.u32 683565275, %v509
        %v513 = vshrl.u32 2475754826, %v510
        %v514 = vor.u32 %v512, %v513
        %v515 = vshll.u32 2475754826, %v509
        %v516 = vshrl.u32 2131351028, %v510
        %v517 = vor.u32 %v515, %v516
        %v518 = vshll.u32 2131351028, %v509
        %v519 = vshrl.u32 2102212464, %v510
        %v520 = vor.u32 %v518, %v519
        %v521 = vshll.u32 2102212464, %v509
        %v522 = vshrl.u32 920167782, %v510
        %v523 = vor.u32 %v521, %v522
        %v524 = vshll.u32 920167782, %v509
        %v525 = vshrl.u32 1326507024, %v510
        %v526 = vor.u32 %v524, %v525
        %vm527 = vcmp.lt.s32.totalorder %v508, 1
        %vm528 = vcmp.lt.s32.totalorder %v508, 2
        %vm529 = vcmp.lt.s32.totalorder %v508, 3
        %vm530 = vcmp.lt.s32.totalorder %v508, 4
        %v531 = vsel %vm527, %v511, %v514
        %v532 = vsel %vm530, %v520, 2102212464
        %v533 = vsel %vm529, %v517, %v532
        %v534 = vsel %vm528, %v531, %v533
        %v535 = vsel %vm527, %v514, %v517
        %v536 = vsel %vm530, %v523, 920167782
        %v537 = vsel %vm529, %v520, %v536
        %v538 = vsel %vm528, %v535, %v537
        %v539 = vsel %vm527, %v517, %v520
        %v540 = vsel %vm530, %v526, 1326507024
        %v541 = vsel %vm529, %v523, %v540
        %v542 = vsel %vm528, %v539, %v541
        %v543 = vshll.u32 %v503, 8
        %v544 = vmul.u32.u64.compose %v543, %v542
        %v545 = vextract.low.u32 %v544
        %v546 = vextract.high.u32 %v544
        %v547 = vmul.u32.u64.compose %v543, %v538
        %v548 = vextract.low.u32 %v547
        %v549 = vextract.high.u32 %v547
        %v550 = vmul.u32 %v543, %v534
        %v551 = vadd.s32 %v546, %v548
        %vm552 = vc.u32 %v546, %v548
        %v553 = vadd.s32 %v549, 1
        %v554 = vsel %vm552, %v553, %v549
        %v555 = vadd.s32 %v550, %v554
        %v556 = vadd.s32 %v555, 536870912
        %v557 = vshrl.u32 %v556, 30
        %v558 = vshll.u32 %v557, 30
        %v559 = vsub.s32 %v555, %v558
        %vm560 = vcmp.lt.s32.totalorder %v559, 0
        %v561 = vsub.s32 0, %v559
        %v562 = vsel %vm560, %v561, %v559
        %v563 = vclz %v562
        %v564 = vsub.s32 %v563, 2
        %vm565 = vcmp.gt.s32.totalorder 0, %v564
        %v566 = vsel %vm565, 0, %v564
        %v567 = vsub.s32 32, %v566
        %v568 = vshll.u32 %v559, %v566
        %v569 = vshrl.u32 %v551, %v567
        %v570 = vor.u32 %v568, %v569
        %v571 = vsub.s32 4294967266, %v566
        %v572 = vadd.s32 %v571, 127
        %v573 = vshll.u32 %v572, 23
        %v574 = vor.u32 4788187, %v573
        %v575 = vand.u32 2147483647, %v574
        %v577 = vcvt.s32.f32 %v570
        %v578 = vmul.f32 %v577, %v575
        %v579 = vxor.u32 %v578, 2147483648
        %v580 = vsel %vm497, %v579, %v578
        %v581 = vsub.s32 4, %v557
        %v582 = vsel %vm497, %v581, %v557
        %v583 = vsel %vm496, %v281, %v580
        %v584 = vsel %vm496, 0, %v582
        %v585 = vcosq.f32.pop %v583
        %v586 = vsinq.f32.pop %v583
        %vm587 = vweird.f32 %v281
        %v588 = vadd.s32 %v584, 3
        %v589 = vand.u32 %v588, 3
        %vm590 = vcmp.lt.s32.totalorder %v589, 2
        %vm591 = vcmp.eq.s32.totalorder %v589, 0
        %v592 = vxor.u32 %v586, 2147483648
        %v593 = vsel %vm591, %v585, %v592
        %vm594 = vcmp.eq.s32.totalorder %v589, 2
        %v595 = vxor.u32 %v585, 2147483648
        %v596 = vsel %vm594, %v595, %v586
        %v597 = vsel %vm590, %v593, %v596
        %v598 = vsel %vm587, nan, %v597
        %v599 = vand.u32 2147483647, %v282
        %vm600 = vcmp.le.f32.partialorder %v599, 0.7853982
        %vm601 = vcmp.lt.s32.totalorder %v282, 0
        %v602 = vand.u32 %v282, 2139095040
        %v603 = vshrl.u32 %v602, 23
        %v604 = vsub.s32 %v603, 127
        %v605 = vand.u32 2147483647, %v282
        %v606 = vand.u32 %v605, 8388607
        %v607 = vor.u32 %v606, 8388608
        %v608 = vsub.s32 0, %v607
        %v609 = vadd.s32 %v604, 1
        %vm610 = vcmp.gt.s32.totalorder %v609, 0
        %v611 = vsel %vm610, %v609, 0
        %v612 = vshrl.u32 %v611, 5
        %v613 = vand.u32 %v611, 31
        %v614 = vsub.s32 32, %v613
        %v615 = vshrl.u32 683565275, %v614
        %v616 = vshll.u32 683565275, %v613
        %v617 = vshrl.u32 2475754826, %v614
        %v618 = vor.u32 %v616, %v617
        %v619 = vshll.u32 2475754826, %v613
        %v620 = vshrl.u32 2131351028, %v614
        %v621 = vor.u32 %v619, %v620
        %v622 = vshll.u32 2131351028, %v613
        %v623 = vshrl.u32 2102212464, %v614
        %v624 = vor.u32 %v622, %v623
        %v625 = vshll.u32 2102212464, %v613
        %v626 = vshrl.u32 920167782, %v614
        %v627 = vor.u32 %v625, %v626
        %v628 = vshll.u32 920167782, %v613
        %v629 = vshrl.u32 1326507024, %v614
        %v630 = vor.u32 %v628, %v629
        %vm631 = vcmp.lt.s32.totalorder %v612, 1
        %vm632 = vcmp.lt.s32.totalorder %v612, 2
        %vm633 = vcmp.lt.s32.totalorder %v612, 3
        %vm634 = vcmp.lt.s32.totalorder %v612, 4
        %v635 = vsel %vm631, %v615, %v618
        %v636 = vsel %vm634, %v624, 2102212464
        %v637 = vsel %vm633, %v621, %v636
        %v638 = vsel %vm632, %v635, %v637
        %v639 = vsel %vm631, %v618, %v621
        %v640 = vsel %vm634, %v627, 920167782
        %v641 = vsel %vm633, %v624, %v640
        %v642 = vsel %vm632, %v639, %v641
        %v643 = vsel %vm631, %v621, %v624
        %v644 = vsel %vm634, %v630, 1326507024
        %v645 = vsel %vm633, %v627, %v644
        %v646 = vsel %vm632, %v643, %v645
        %v647 = vshll.u32 %v607, 8
        %v648 = vmul.u32.u64.compose %v647, %v646
        %v649 = vextract.low.u32 %v648
        %v650 = vextract.high.u32 %v648
        %v651 = vmul.u32.u64.compose %v647, %v642
        %v652 = vextract.low.u32 %v651
        %v653 = vextract.high.u32 %v651
        %v654 = vmul.u32 %v647, %v638
        %v655 = vadd.s32 %v650, %v652
        %vm656 = vc.u32 %v650, %v652
        %v657 = vadd.s32 %v653, 1
        %v658 = vsel %vm656, %v657, %v653
        %v659 = vadd.s32 %v654, %v658
        %v660 = vadd.s32 %v659, 536870912
        %v661 = vshrl.u32 %v660, 30
        %v662 = vshll.u32 %v661, 30
        %v663 = vsub.s32 %v659, %v662
        %vm664 = vcmp.lt.s32.totalorder %v663, 0
        %v665 = vsub.s32 0, %v663
        %v666 = vsel %vm664, %v665, %v663
        %v667 = vclz %v666
        %v668 = vsub.s32 %v667, 2
        %vm669 = vcmp.gt.s32.totalorder 0, %v668
        %v670 = vsel %vm669, 0, %v668
        %v671 = vsub.s32 32, %v670
        %v672 = vshll.u32 %v663, %v670
        %v673 = vshrl.u32 %v655, %v671
        %v674 = vor.u32 %v672, %v673
        %v675 = vsub.s32 4294967266, %v670
        %v676 = vadd.s32 %v675, 127
        %v677 = vshll.u32 %v676, 23
        %v678 = vor.u32 4788187, %v677
        %v679 = vand.u32 2147483647, %v678
        %v681 = vcvt.s32.f32 %v674
        %v682 = vmul.f32 %v681, %v679
        %v683 = vxor.u32 %v682, 2147483648
        %v684 = vsel %vm601, %v683, %v682
        %v685 = vsub.s32 4, %v661
        %v686 = vsel %vm601, %v685, %v661
        %v687 = vsel %vm600, %v282, %v684
        %v688 = vsel %vm600, 0, %v686
        %v689 = vcosq.f32.pop %v687
        %v690 = vsinq.f32.pop %v687
        %vm691 = vweird.f32 %v282
        %v692 = vadd.s32 %v688, 3
        %v693 = vand.u32 %v692, 3
        %vm694 = vcmp.lt.s32.totalorder %v693, 2
        %vm695 = vcmp.eq.s32.totalorder %v693, 0
        %v696 = vxor.u32 %v690, 2147483648
        %v697 = vsel %vm695, %v689, %v696
        %vm698 = vcmp.eq.s32.totalorder %v693, 2
        %v699 = vxor.u32 %v689, 2147483648
        %v700 = vsel %vm698, %v699, %v690
        %v701 = vsel %vm694, %v697, %v700
        %v702 = vsel %vm691, nan, %v701
        %v703 = vand.u32 2147483647, %v283
        %vm704 = vcmp.le.f32.partialorder %v703, 0.7853982
        %vm705 = vcmp.lt.s32.totalorder %v283, 0
        %v706 = vand.u32 %v283, 2139095040
        %v707 = vshrl.u32 %v706, 23
        %v708 = vsub.s32 %v707, 127
        %v709 = vand.u32 2147483647, %v283
        %v710 = vand.u32 %v709, 8388607
        %v711 = vor.u32 %v710, 8388608
        %v712 = vsub.s32 0, %v711
        %v713 = vadd.s32 %v708, 1
        %vm714 = vcmp.gt.s32.totalorder %v713, 0
        %v715 = vsel %vm714, %v713, 0
        %v716 = vshrl.u32 %v715, 5
        %v717 = vand.u32 %v715, 31
        %v718 = vsub.s32 32, %v717
        %v719 = vshrl.u32 683565275, %v718
        %v720 = vshll.u32 683565275, %v717
        %v721 = vshrl.u32 2475754826, %v718
        %v722 = vor.u32 %v720, %v721
        %v723 = vshll.u32 2475754826, %v717
        %v724 = vshrl.u32 2131351028, %v718
        %v725 = vor.u32 %v723, %v724
        %v726 = vshll.u32 2131351028, %v717
        %v727 = vshrl.u32 2102212464, %v718
        %v728 = vor.u32 %v726, %v727
        %v729 = vshll.u32 2102212464, %v717
        %v730 = vshrl.u32 920167782, %v718
        %v731 = vor.u32 %v729, %v730
        %v732 = vshll.u32 920167782, %v717
        %v733 = vshrl.u32 1326507024, %v718
        %v734 = vor.u32 %v732, %v733
        %vm735 = vcmp.lt.s32.totalorder %v716, 1
        %vm736 = vcmp.lt.s32.totalorder %v716, 2
        %vm737 = vcmp.lt.s32.totalorder %v716, 3
        %vm738 = vcmp.lt.s32.totalorder %v716, 4
        %v739 = vsel %vm735, %v719, %v722
        %v740 = vsel %vm738, %v728, 2102212464
        %v741 = vsel %vm737, %v725, %v740
        %v742 = vsel %vm736, %v739, %v741
        %v743 = vsel %vm735, %v722, %v725
        %v744 = vsel %vm738, %v731, 920167782
        %v745 = vsel %vm737, %v728, %v744
        %v746 = vsel %vm736, %v743, %v745
        %v747 = vsel %vm735, %v725, %v728
        %v748 = vsel %vm738, %v734, 1326507024
        %v749 = vsel %vm737, %v731, %v748
        %v750 = vsel %vm736, %v747, %v749
        %v751 = vshll.u32 %v711, 8
        %v752 = vmul.u32.u64.compose %v751, %v750
        %v753 = vextract.low.u32 %v752
        %v754 = vextract.high.u32 %v752
        %v755 = vmul.u32.u64.compose %v751, %v746
        %v756 = vextract.low.u32 %v755
        %v757 = vextract.high.u32 %v755
        %v758 = vmul.u32 %v751, %v742
        %v759 = vadd.s32 %v754, %v756
        %vm760 = vc.u32 %v754, %v756
        %v761 = vadd.s32 %v757, 1
        %v762 = vsel %vm760, %v761, %v757
        %v763 = vadd.s32 %v758, %v762
        %v764 = vadd.s32 %v763, 536870912
        %v765 = vshrl.u32 %v764, 30
        %v766 = vshll.u32 %v765, 30
        %v767 = vsub.s32 %v763, %v766
        %vm768 = vcmp.lt.s32.totalorder %v767, 0
        %v769 = vsub.s32 0, %v767
        %v770 = vsel %vm768, %v769, %v767
        %v771 = vclz %v770
        %v772 = vsub.s32 %v771, 2
        %vm773 = vcmp.gt.s32.totalorder 0, %v772
        %v774 = vsel %vm773, 0, %v772
        %v775 = vsub.s32 32, %v774
        %v776 = vshll.u32 %v767, %v774
        %v777 = vshrl.u32 %v759, %v775
        %v778 = vor.u32 %v776, %v777
        %v779 = vsub.s32 4294967266, %v774
        %v780 = vadd.s32 %v779, 127
        %v781 = vshll.u32 %v780, 23
        %v782 = vor.u32 4788187, %v781
        %v783 = vand.u32 2147483647, %v782
        %v785 = vcvt.s32.f32 %v778
        %v786 = vmul.f32 %v785, %v783
        %v787 = vxor.u32 %v786, 2147483648
        %v788 = vsel %vm705, %v787, %v786
        %v789 = vsub.s32 4, %v765
        %v790 = vsel %vm705, %v789, %v765
        %v791 = vsel %vm704, %v283, %v788
        %v792 = vsel %vm704, 0, %v790
        %v793 = vcosq.f32.pop %v791
        %v794 = vsinq.f32.pop %v791
        %vm795 = vweird.f32 %v283
        %v796 = vadd.s32 %v792, 3
        %v797 = vand.u32 %v796, 3
        %vm798 = vcmp.lt.s32.totalorder %v797, 2
        %vm799 = vcmp.eq.s32.totalorder %v797, 0
        %v800 = vxor.u32 %v794, 2147483648
        %v801 = vsel %vm799, %v793, %v800
        %vm802 = vcmp.eq.s32.totalorder %v797, 2
        %v803 = vxor.u32 %v793, 2147483648
        %v804 = vsel %vm802, %v803, %v794
        %v805 = vsel %vm798, %v801, %v804
        %v806 = vsel %vm795, nan, %v805
        %v807 = vand.u32 2147483647, %v284
        %vm808 = vcmp.le.f32.partialorder %v807, 0.7853982
        %vm809 = vcmp.lt.s32.totalorder %v284, 0
        %v810 = vand.u32 %v284, 2139095040
        %v811 = vshrl.u32 %v810, 23
        %v812 = vsub.s32 %v811, 127
        %v813 = vand.u32 2147483647, %v284
        %v814 = vand.u32 %v813, 8388607
        %v815 = vor.u32 %v814, 8388608
        %v816 = vsub.s32 0, %v815
        %v817 = vadd.s32 %v812, 1
        %vm818 = vcmp.gt.s32.totalorder %v817, 0
        %v819 = vsel %vm818, %v817, 0
        %v820 = vshrl.u32 %v819, 5
        %v821 = vand.u32 %v819, 31
        %v822 = vsub.s32 32, %v821
        %v823 = vshrl.u32 683565275, %v822
        %v824 = vshll.u32 683565275, %v821
        %v825 = vshrl.u32 2475754826, %v822
        %v826 = vor.u32 %v824, %v825
        %v827 = vshll.u32 2475754826, %v821
        %v828 = vshrl.u32 2131351028, %v822
        %v829 = vor.u32 %v827, %v828
        %v830 = vshll.u32 2131351028, %v821
        %v831 = vshrl.u32 2102212464, %v822
        %v832 = vor.u32 %v830, %v831
        %v833 = vshll.u32 2102212464, %v821
        %v834 = vshrl.u32 920167782, %v822
        %v835 = vor.u32 %v833, %v834
        %v836 = vshll.u32 920167782, %v821
        %v837 = vshrl.u32 1326507024, %v822
        %v838 = vor.u32 %v836, %v837
        %vm839 = vcmp.lt.s32.totalorder %v820, 1
        %vm840 = vcmp.lt.s32.totalorder %v820, 2
        %vm841 = vcmp.lt.s32.totalorder %v820, 3
        %vm842 = vcmp.lt.s32.totalorder %v820, 4
        %v843 = vsel %vm839, %v823, %v826
        %v844 = vsel %vm842, %v832, 2102212464
        %v845 = vsel %vm841, %v829, %v844
        %v846 = vsel %vm840, %v843, %v845
        %v847 = vsel %vm839, %v826, %v829
        %v848 = vsel %vm842, %v835, 920167782
        %v849 = vsel %vm841, %v832, %v848
        %v850 = vsel %vm840, %v847, %v849
        %v851 = vsel %vm839, %v829, %v832
        %v852 = vsel %vm842, %v838, 1326507024
        %v853 = vsel %vm841, %v835, %v852
        %v854 = vsel %vm840, %v851, %v853
        %v855 = vshll.u32 %v815, 8
        %v856 = vmul.u32.u64.compose %v855, %v854
        %v857 = vextract.low.u32 %v856
        %v858 = vextract.high.u32 %v856
        %v859 = vmul.u32.u64.compose %v855, %v850
        %v860 = vextract.low.u32 %v859
        %v861 = vextract.high.u32 %v859
        %v862 = vmul.u32 %v855, %v846
        %v863 = vadd.s32 %v858, %v860
        %vm864 = vc.u32 %v858, %v860
        %v865 = vadd.s32 %v861, 1
        %v866 = vsel %vm864, %v865, %v861
        %v867 = vadd.s32 %v862, %v866
        %v868 = vadd.s32 %v867, 536870912
        %v869 = vshrl.u32 %v868, 30
        %v870 = vshll.u32 %v869, 30
        %v871 = vsub.s32 %v867, %v870
        %vm872 = vcmp.lt.s32.totalorder %v871, 0
        %v873 = vsub.s32 0, %v871
        %v874 = vsel %vm872, %v873, %v871
        %v875 = vclz %v874
        %v876 = vsub.s32 %v875, 2
        %vm877 = vcmp.gt.s32.totalorder 0, %v876
        %v878 = vsel %vm877, 0, %v876
        %v879 = vsub.s32 32, %v878
        %v880 = vshll.u32 %v871, %v878
        %v881 = vshrl.u32 %v863, %v879
        %v882 = vor.u32 %v880, %v881
        %v883 = vsub.s32 4294967266, %v878
        %v884 = vadd.s32 %v883, 127
        %v885 = vshll.u32 %v884, 23
        %v886 = vor.u32 4788187, %v885
        %v887 = vand.u32 2147483647, %v886
        %v889 = vcvt.s32.f32 %v882
        %v890 = vmul.f32 %v889, %v887
        %v891 = vxor.u32 %v890, 2147483648
        %v892 = vsel %vm809, %v891, %v890
        %v893 = vsub.s32 4, %v869
        %v894 = vsel %vm809, %v893, %v869
        %v895 = vsel %vm808, %v284, %v892
        %v896 = vsel %vm808, 0, %v894
        %v897 = vcosq.f32.pop %v895
        %v898 = vsinq.f32.pop %v895
        %vm899 = vweird.f32 %v284
        %v900 = vadd.s32 %v896, 3
        %v901 = vand.u32 %v900, 3
        %vm902 = vcmp.lt.s32.totalorder %v901, 2
        %vm903 = vcmp.eq.s32.totalorder %v901, 0
        %v904 = vxor.u32 %v898, 2147483648
        %v905 = vsel %vm903, %v897, %v904
        %vm906 = vcmp.eq.s32.totalorder %v901, 2
        %v907 = vxor.u32 %v897, 2147483648
        %v908 = vsel %vm906, %v907, %v898
        %v909 = vsel %vm902, %v905, %v908
        %v910 = vsel %vm899, nan, %v909
        %v911 = vand.u32 2147483647, %v285
        %vm912 = vcmp.le.f32.partialorder %v911, 0.7853982
        %vm913 = vcmp.lt.s32.totalorder %v285, 0
        %v914 = vand.u32 %v285, 2139095040
        %v915 = vshrl.u32 %v914, 23
        %v916 = vsub.s32 %v915, 127
        %v917 = vand.u32 2147483647, %v285
        %v918 = vand.u32 %v917, 8388607
        %v919 = vor.u32 %v918, 8388608
        %v920 = vsub.s32 0, %v919
        %v921 = vadd.s32 %v916, 1
        %vm922 = vcmp.gt.s32.totalorder %v921, 0
        %v923 = vsel %vm922, %v921, 0
        %v924 = vshrl.u32 %v923, 5
        %v925 = vand.u32 %v923, 31
        %v926 = vsub.s32 32, %v925
        %v927 = vshrl.u32 683565275, %v926
        %v928 = vshll.u32 683565275, %v925
        %v929 = vshrl.u32 2475754826, %v926
        %v930 = vor.u32 %v928, %v929
        %v931 = vshll.u32 2475754826, %v925
        %v932 = vshrl.u32 2131351028, %v926
        %v933 = vor.u32 %v931, %v932
        %v934 = vshll.u32 2131351028, %v925
        %v935 = vshrl.u32 2102212464, %v926
        %v936 = vor.u32 %v934, %v935
        %v937 = vshll.u32 2102212464, %v925
        %v938 = vshrl.u32 920167782, %v926
        %v939 = vor.u32 %v937, %v938
        %v940 = vshll.u32 920167782, %v925
        %v941 = vshrl.u32 1326507024, %v926
        %v942 = vor.u32 %v940, %v941
        %vm943 = vcmp.lt.s32.totalorder %v924, 1
        %vm944 = vcmp.lt.s32.totalorder %v924, 2
        %vm945 = vcmp.lt.s32.totalorder %v924, 3
        %vm946 = vcmp.lt.s32.totalorder %v924, 4
        %v947 = vsel %vm943, %v927, %v930
        %v948 = vsel %vm946, %v936, 2102212464
        %v949 = vsel %vm945, %v933, %v948
        %v950 = vsel %vm944, %v947, %v949
        %v951 = vsel %vm943, %v930, %v933
        %v952 = vsel %vm946, %v939, 920167782
        %v953 = vsel %vm945, %v936, %v952
        %v954 = vsel %vm944, %v951, %v953
        %v955 = vsel %vm943, %v933, %v936
        %v956 = vsel %vm946, %v942, 1326507024
        %v957 = vsel %vm945, %v939, %v956
        %v958 = vsel %vm944, %v955, %v957
        %v959 = vshll.u32 %v919, 8
        %v960 = vmul.u32.u64.compose %v959, %v958
        %v961 = vextract.low.u32 %v960
        %v962 = vextract.high.u32 %v960
        %v963 = vmul.u32.u64.compose %v959, %v954
        %v964 = vextract.low.u32 %v963
        %v965 = vextract.high.u32 %v963
        %v966 = vmul.u32 %v959, %v950
        %v967 = vadd.s32 %v962, %v964
        %vm968 = vc.u32 %v962, %v964
        %v969 = vadd.s32 %v965, 1
        %v970 = vsel %vm968, %v969, %v965
        %v971 = vadd.s32 %v966, %v970
        %v972 = vadd.s32 %v971, 536870912
        %v973 = vshrl.u32 %v972, 30
        %v974 = vshll.u32 %v973, 30
        %v975 = vsub.s32 %v971, %v974
        %vm976 = vcmp.lt.s32.totalorder %v975, 0
        %v977 = vsub.s32 0, %v975
        %v978 = vsel %vm976, %v977, %v975
        %v979 = vclz %v978
        %v980 = vsub.s32 %v979, 2
        %vm981 = vcmp.gt.s32.totalorder 0, %v980
        %v982 = vsel %vm981, 0, %v980
        %v983 = vsub.s32 32, %v982
        %v984 = vshll.u32 %v975, %v982
        %v985 = vshrl.u32 %v967, %v983
        %v986 = vor.u32 %v984, %v985
        %v987 = vsub.s32 4294967266, %v982
        %v988 = vadd.s32 %v987, 127
        %v989 = vshll.u32 %v988, 23
        %v990 = vor.u32 4788187, %v989
        %v991 = vand.u32 2147483647, %v990
        %v993 = vcvt.s32.f32 %v986
        %v994 = vmul.f32 %v993, %v991
        %v995 = vxor.u32 %v994, 2147483648
        %v996 = vsel %vm913, %v995, %v994
        %v997 = vsub.s32 4, %v973
        %v998 = vsel %vm913, %v997, %v973
        %v999 = vsel %vm912, %v285, %v996
        %v1000 = vsel %vm912, 0, %v998
        %v1001 = vcosq.f32.pop %v999
        %v1002 = vsinq.f32.pop %v999
        %vm1003 = vweird.f32 %v285
        %v1004 = vadd.s32 %v1000, 3
        %v1005 = vand.u32 %v1004, 3
        %vm1006 = vcmp.lt.s32.totalorder %v1005, 2
        %vm1007 = vcmp.eq.s32.totalorder %v1005, 0
        %v1008 = vxor.u32 %v1002, 2147483648
        %v1009 = vsel %vm1007, %v1001, %v1008
        %vm1010 = vcmp.eq.s32.totalorder %v1005, 2
        %v1011 = vxor.u32 %v1001, 2147483648
        %v1012 = vsel %vm1010, %v1011, %v1002
        %v1013 = vsel %vm1006, %v1009, %v1012
        %v1014 = vsel %vm1003, nan, %v1013
        %v1015 = vand.u32 2147483647, %v286
        %vm1016 = vcmp.le.f32.partialorder %v1015, 0.7853982
        %vm1017 = vcmp.lt.s32.totalorder %v286, 0
        %v1018 = vand.u32 %v286, 2139095040
        %v1019 = vshrl.u32 %v1018, 23
        %v1020 = vsub.s32 %v1019, 127
        %v1021 = vand.u32 2147483647, %v286
        %v1022 = vand.u32 %v1021, 8388607
        %v1023 = vor.u32 %v1022, 8388608
        %v1024 = vsub.s32 0, %v1023
        %v1025 = vadd.s32 %v1020, 1
        %vm1026 = vcmp.gt.s32.totalorder %v1025, 0
        %v1027 = vsel %vm1026, %v1025, 0
        %v1028 = vshrl.u32 %v1027, 5
        %v1029 = vand.u32 %v1027, 31
        %v1030 = vsub.s32 32, %v1029
        %v1031 = vshrl.u32 683565275, %v1030
        %v1032 = vshll.u32 683565275, %v1029
        %v1033 = vshrl.u32 2475754826, %v1030
        %v1034 = vor.u32 %v1032, %v1033
        %v1035 = vshll.u32 2475754826, %v1029
        %v1036 = vshrl.u32 2131351028, %v1030
        %v1037 = vor.u32 %v1035, %v1036
        %v1038 = vshll.u32 2131351028, %v1029
        %v1039 = vshrl.u32 2102212464, %v1030
        %v1040 = vor.u32 %v1038, %v1039
        %v1041 = vshll.u32 2102212464, %v1029
        %v1042 = vshrl.u32 920167782, %v1030
        %v1043 = vor.u32 %v1041, %v1042
        %v1044 = vshll.u32 920167782, %v1029
        %v1045 = vshrl.u32 1326507024, %v1030
        %v1046 = vor.u32 %v1044, %v1045
        %vm1047 = vcmp.lt.s32.totalorder %v1028, 1
        %vm1048 = vcmp.lt.s32.totalorder %v1028, 2
        %vm1049 = vcmp.lt.s32.totalorder %v1028, 3
        %vm1050 = vcmp.lt.s32.totalorder %v1028, 4
        %v1051 = vsel %vm1047, %v1031, %v1034
        %v1052 = vsel %vm1050, %v1040, 2102212464
        %v1053 = vsel %vm1049, %v1037, %v1052
        %v1054 = vsel %vm1048, %v1051, %v1053
        %v1055 = vsel %vm1047, %v1034, %v1037
        %v1056 = vsel %vm1050, %v1043, 920167782
        %v1057 = vsel %vm1049, %v1040, %v1056
        %v1058 = vsel %vm1048, %v1055, %v1057
        %v1059 = vsel %vm1047, %v1037, %v1040
        %v1060 = vsel %vm1050, %v1046, 1326507024
        %v1061 = vsel %vm1049, %v1043, %v1060
        %v1062 = vsel %vm1048, %v1059, %v1061
        %v1063 = vshll.u32 %v1023, 8
        %v1064 = vmul.u32.u64.compose %v1063, %v1062
        %v1065 = vextract.low.u32 %v1064
        %v1066 = vextract.high.u32 %v1064
        %v1067 = vmul.u32.u64.compose %v1063, %v1058
        %v1068 = vextract.low.u32 %v1067
        %v1069 = vextract.high.u32 %v1067
        %v1070 = vmul.u32 %v1063, %v1054
        %v1071 = vadd.s32 %v1066, %v1068
        %vm1072 = vc.u32 %v1066, %v1068
        %v1073 = vadd.s32 %v1069, 1
        %v1074 = vsel %vm1072, %v1073, %v1069
        %v1075 = vadd.s32 %v1070, %v1074
        %v1076 = vadd.s32 %v1075, 536870912
        %v1077 = vshrl.u32 %v1076, 30
        %v1078 = vshll.u32 %v1077, 30
        %v1079 = vsub.s32 %v1075, %v1078
        %vm1080 = vcmp.lt.s32.totalorder %v1079, 0
        %v1081 = vsub.s32 0, %v1079
        %v1082 = vsel %vm1080, %v1081, %v1079
        %v1083 = vclz %v1082
        %v1084 = vsub.s32 %v1083, 2
        %vm1085 = vcmp.gt.s32.totalorder 0, %v1084
        %v1086 = vsel %vm1085, 0, %v1084
        %v1087 = vsub.s32 32, %v1086
        %v1088 = vshll.u32 %v1079, %v1086
        %v1089 = vshrl.u32 %v1071, %v1087
        %v1090 = vor.u32 %v1088, %v1089
        %v1091 = vsub.s32 4294967266, %v1086
        %v1092 = vadd.s32 %v1091, 127
        %v1093 = vshll.u32 %v1092, 23
        %v1094 = vor.u32 4788187, %v1093
        %v1095 = vand.u32 2147483647, %v1094
        %v1097 = vcvt.s32.f32 %v1090
        %v1098 = vmul.f32 %v1097, %v1095
        %v1099 = vxor.u32 %v1098, 2147483648
        %v1100 = vsel %vm1017, %v1099, %v1098
        %v1101 = vsub.s32 4, %v1077
        %v1102 = vsel %vm1017, %v1101, %v1077
        %v1103 = vsel %vm1016, %v286, %v1100
        %v1104 = vsel %vm1016, 0, %v1102
        %v1105 = vcosq.f32.pop %v1103
        %v1106 = vsinq.f32.pop %v1103
        %vm1107 = vweird.f32 %v286
        %v1108 = vadd.s32 %v1104, 3
        %v1109 = vand.u32 %v1108, 3
        %vm1110 = vcmp.lt.s32.totalorder %v1109, 2
        %vm1111 = vcmp.eq.s32.totalorder %v1109, 0
        %v1112 = vxor.u32 %v1106, 2147483648
        %v1113 = vsel %vm1111, %v1105, %v1112
        %vm1114 = vcmp.eq.s32.totalorder %v1109, 2
        %v1115 = vxor.u32 %v1105, 2147483648
        %v1116 = vsel %vm1114, %v1115, %v1106
        %v1117 = vsel %vm1110, %v1113, %v1116
        %v1118 = vsel %vm1107, nan, %v1117
        %v1119 = vld [vmem:[%s194] ss:$2 sm:$0x3]
        %v1121 = vlaneseq
        %v1122 = vshrl.u32 %v1121, 7
        %v1123 = vsub.s32 0, %v1122
        %v1124 = vrot.slane %v1119, %v1123
        %v1125 = vlaneseq
        %v1126 = vshrl.u32 %v1125, 7
        %v1127 = vsub.s32 1, %v1126
        %v1128 = vrot.slane %v1119, %v1127
        %1131 = vset.pattern.permute.xlu0 0
        %1132 = vperm.xlu0 %1131, %v200
        %v1133 = vpop.permute.xlu0 %1132
        %1135 = vset.pattern.permute.xlu0 0
        %1136 = vperm.xlu0 %1135, %v201
        %v1137 = vpop.permute.xlu0 %1136
        %1139 = vset.pattern.permute.xlu0 0
        %1140 = vperm.xlu0 %1139, %v202
        %v1141 = vpop.permute.xlu0 %1140
        %1143 = vset.pattern.permute.xlu0 0
        %1144 = vperm.xlu0 %1143, %v203
        %v1145 = vpop.permute.xlu0 %1144
        %v1147 = vmul.f32 %v1124, %v1133
        %v1148 = vmul.f32 %v1128, %v1133
        %v1149 = vmul.f32 %v1124, %v1137
        %v1150 = vmul.f32 %v1128, %v1137
        %v1151 = vmul.f32 %v1124, %v1141
        %v1152 = vmul.f32 %v1128, %v1141
        %v1153 = vmul.f32 %v1124, %v1145
        %v1154 = vmul.f32 %v1128, %v1145
        %1155 = vset.pattern.permute.xlu0 1
        %1156 = vperm.xlu0 %1155, %v200
        %v1157 = vpop.permute.xlu0 %1156
        %1159 = vset.pattern.permute.xlu0 1
        %1160 = vperm.xlu0 %1159, %v201
        %v1161 = vpop.permute.xlu0 %1160
        %1163 = vset.pattern.permute.xlu0 1
        %1164 = vperm.xlu0 %1163, %v202
        %v1165 = vpop.permute.xlu0 %1164
        %1167 = vset.pattern.permute.xlu0 1
        %1168 = vperm.xlu0 %1167, %v203
        %v1169 = vpop.permute.xlu0 %1168
        %v1171 = vadd.f32 %v1147, %v1157
        %v1172 = vadd.f32 %v1148, %v1157
        %v1173 = vadd.f32 %v1149, %v1161
        %v1174 = vadd.f32 %v1150, %v1161
        %v1175 = vadd.f32 %v1151, %v1165
        %v1176 = vadd.f32 %v1152, %v1165
        %v1177 = vadd.f32 %v1153, %v1169
        %v1178 = vadd.f32 %v1154, %v1169
        %v1179 = vand.u32 2147483647, %v1171
        %vm1180 = vcmp.le.f32.partialorder %v1179, 0.7853982
        %vm1181 = vcmp.lt.s32.totalorder %v1171, 0
        %v1182 = vand.u32 %v1171, 2139095040
        %v1183 = vshrl.u32 %v1182, 23
        %v1184 = vsub.s32 %v1183, 127
        %v1185 = vand.u32 2147483647, %v1171
        %v1186 = vand.u32 %v1185, 8388607
        %v1187 = vor.u32 %v1186, 8388608
        %v1188 = vsub.s32 0, %v1187
        %v1189 = vadd.s32 %v1184, 1
        %vm1190 = vcmp.gt.s32.totalorder %v1189, 0
        %v1191 = vsel %vm1190, %v1189, 0
        %v1192 = vshrl.u32 %v1191, 5
        %v1193 = vand.u32 %v1191, 31
        %v1194 = vsub.s32 32, %v1193
        %v1195 = vshrl.u32 683565275, %v1194
        %v1196 = vshll.u32 683565275, %v1193
        %v1197 = vshrl.u32 2475754826, %v1194
        %v1198 = vor.u32 %v1196, %v1197
        %v1199 = vshll.u32 2475754826, %v1193
        %v1200 = vshrl.u32 2131351028, %v1194
        %v1201 = vor.u32 %v1199, %v1200
        %v1202 = vshll.u32 2131351028, %v1193
        %v1203 = vshrl.u32 2102212464, %v1194
        %v1204 = vor.u32 %v1202, %v1203
        %v1205 = vshll.u32 2102212464, %v1193
        %v1206 = vshrl.u32 920167782, %v1194
        %v1207 = vor.u32 %v1205, %v1206
        %v1208 = vshll.u32 920167782, %v1193
        %v1209 = vshrl.u32 1326507024, %v1194
        %v1210 = vor.u32 %v1208, %v1209
        %vm1211 = vcmp.lt.s32.totalorder %v1192, 1
        %vm1212 = vcmp.lt.s32.totalorder %v1192, 2
        %vm1213 = vcmp.lt.s32.totalorder %v1192, 3
        %vm1214 = vcmp.lt.s32.totalorder %v1192, 4
        %v1215 = vsel %vm1211, %v1195, %v1198
        %v1216 = vsel %vm1214, %v1204, 2102212464
        %v1217 = vsel %vm1213, %v1201, %v1216
        %v1218 = vsel %vm1212, %v1215, %v1217
        %v1219 = vsel %vm1211, %v1198, %v1201
        %v1220 = vsel %vm1214, %v1207, 920167782
        %v1221 = vsel %vm1213, %v1204, %v1220
        %v1222 = vsel %vm1212, %v1219, %v1221
        %v1223 = vsel %vm1211, %v1201, %v1204
        %v1224 = vsel %vm1214, %v1210, 1326507024
        %v1225 = vsel %vm1213, %v1207, %v1224
        %v1226 = vsel %vm1212, %v1223, %v1225
        %v1227 = vshll.u32 %v1187, 8
        %v1228 = vmul.u32.u64.compose %v1227, %v1226
        %v1229 = vextract.low.u32 %v1228
        %v1230 = vextract.high.u32 %v1228
        %v1231 = vmul.u32.u64.compose %v1227, %v1222
        %v1232 = vextract.low.u32 %v1231
        %v1233 = vextract.high.u32 %v1231
        %v1234 = vmul.u32 %v1227, %v1218
        %v1235 = vadd.s32 %v1230, %v1232
        %vm1236 = vc.u32 %v1230, %v1232
        %v1237 = vadd.s32 %v1233, 1
        %v1238 = vsel %vm1236, %v1237, %v1233
        %v1239 = vadd.s32 %v1234, %v1238
        %v1240 = vadd.s32 %v1239, 536870912
        %v1241 = vshrl.u32 %v1240, 30
        %v1242 = vshll.u32 %v1241, 30
        %v1243 = vsub.s32 %v1239, %v1242
        %vm1244 = vcmp.lt.s32.totalorder %v1243, 0
        %v1245 = vsub.s32 0, %v1243
        %v1246 = vsel %vm1244, %v1245, %v1243
        %v1247 = vclz %v1246
        %v1248 = vsub.s32 %v1247, 2
        %vm1249 = vcmp.gt.s32.totalorder 0, %v1248
        %v1250 = vsel %vm1249, 0, %v1248
        %v1251 = vsub.s32 32, %v1250
        %v1252 = vshll.u32 %v1243, %v1250
        %v1253 = vshrl.u32 %v1235, %v1251
        %v1254 = vor.u32 %v1252, %v1253
        %v1255 = vsub.s32 4294967266, %v1250
        %v1256 = vadd.s32 %v1255, 127
        %v1257 = vshll.u32 %v1256, 23
        %v1258 = vor.u32 4788187, %v1257
        %v1259 = vand.u32 2147483647, %v1258
        %v1261 = vcvt.s32.f32 %v1254
        %v1262 = vmul.f32 %v1261, %v1259
        %v1263 = vxor.u32 %v1262, 2147483648
        %v1264 = vsel %vm1181, %v1263, %v1262
        %v1265 = vsub.s32 4, %v1241
        %v1266 = vsel %vm1181, %v1265, %v1241
        %v1267 = vsel %vm1180, %v1171, %v1264
        %v1268 = vsel %vm1180, 0, %v1266
        %v1269 = vcosq.f32.pop %v1267
        %v1270 = vsinq.f32.pop %v1267
        %vm1271 = vweird.f32 %v1171
        %v1272 = vadd.s32 %v1268, 3
        %v1273 = vand.u32 %v1272, 3
        %vm1274 = vcmp.lt.s32.totalorder %v1273, 2
        %vm1275 = vcmp.eq.s32.totalorder %v1273, 0
        %v1276 = vxor.u32 %v1270, 2147483648
        %v1277 = vsel %vm1275, %v1269, %v1276
        %vm1278 = vcmp.eq.s32.totalorder %v1273, 2
        %v1279 = vxor.u32 %v1269, 2147483648
        %v1280 = vsel %vm1278, %v1279, %v1270
        %v1281 = vsel %vm1274, %v1277, %v1280
        %v1282 = vsel %vm1271, nan, %v1281
        %v1283 = vand.u32 2147483647, %v1172
        %vm1284 = vcmp.le.f32.partialorder %v1283, 0.7853982
        %vm1285 = vcmp.lt.s32.totalorder %v1172, 0
        %v1286 = vand.u32 %v1172, 2139095040
        %v1287 = vshrl.u32 %v1286, 23
        %v1288 = vsub.s32 %v1287, 127
        %v1289 = vand.u32 2147483647, %v1172
        %v1290 = vand.u32 %v1289, 8388607
        %v1291 = vor.u32 %v1290, 8388608
        %v1292 = vsub.s32 0, %v1291
        %v1293 = vadd.s32 %v1288, 1
        %vm1294 = vcmp.gt.s32.totalorder %v1293, 0
        %v1295 = vsel %vm1294, %v1293, 0
        %v1296 = vshrl.u32 %v1295, 5
        %v1297 = vand.u32 %v1295, 31
        %v1298 = vsub.s32 32, %v1297
        %v1299 = vshrl.u32 683565275, %v1298
        %v1300 = vshll.u32 683565275, %v1297
        %v1301 = vshrl.u32 2475754826, %v1298
        %v1302 = vor.u32 %v1300, %v1301
        %v1303 = vshll.u32 2475754826, %v1297
        %v1304 = vshrl.u32 2131351028, %v1298
        %v1305 = vor.u32 %v1303, %v1304
        %v1306 = vshll.u32 2131351028, %v1297
        %v1307 = vshrl.u32 2102212464, %v1298
        %v1308 = vor.u32 %v1306, %v1307
        %v1309 = vshll.u32 2102212464, %v1297
        %v1310 = vshrl.u32 920167782, %v1298
        %v1311 = vor.u32 %v1309, %v1310
        %v1312 = vshll.u32 920167782, %v1297
        %v1313 = vshrl.u32 1326507024, %v1298
        %v1314 = vor.u32 %v1312, %v1313
        %vm1315 = vcmp.lt.s32.totalorder %v1296, 1
        %vm1316 = vcmp.lt.s32.totalorder %v1296, 2
        %vm1317 = vcmp.lt.s32.totalorder %v1296, 3
        %vm1318 = vcmp.lt.s32.totalorder %v1296, 4
        %v1319 = vsel %vm1315, %v1299, %v1302
        %v1320 = vsel %vm1318, %v1308, 2102212464
        %v1321 = vsel %vm1317, %v1305, %v1320
        %v1322 = vsel %vm1316, %v1319, %v1321
        %v1323 = vsel %vm1315, %v1302, %v1305
        %v1324 = vsel %vm1318, %v1311, 920167782
        %v1325 = vsel %vm1317, %v1308, %v1324
        %v1326 = vsel %vm1316, %v1323, %v1325
        %v1327 = vsel %vm1315, %v1305, %v1308
        %v1328 = vsel %vm1318, %v1314, 1326507024
        %v1329 = vsel %vm1317, %v1311, %v1328
        %v1330 = vsel %vm1316, %v1327, %v1329
        %v1331 = vshll.u32 %v1291, 8
        %v1332 = vmul.u32.u64.compose %v1331, %v1330
        %v1333 = vextract.low.u32 %v1332
        %v1334 = vextract.high.u32 %v1332
        %v1335 = vmul.u32.u64.compose %v1331, %v1326
        %v1336 = vextract.low.u32 %v1335
        %v1337 = vextract.high.u32 %v1335
        %v1338 = vmul.u32 %v1331, %v1322
        %v1339 = vadd.s32 %v1334, %v1336
        %vm1340 = vc.u32 %v1334, %v1336
        %v1341 = vadd.s32 %v1337, 1
        %v1342 = vsel %vm1340, %v1341, %v1337
        %v1343 = vadd.s32 %v1338, %v1342
        %v1344 = vadd.s32 %v1343, 536870912
        %v1345 = vshrl.u32 %v1344, 30
        %v1346 = vshll.u32 %v1345, 30
        %v1347 = vsub.s32 %v1343, %v1346
        %vm1348 = vcmp.lt.s32.totalorder %v1347, 0
        %v1349 = vsub.s32 0, %v1347
        %v1350 = vsel %vm1348, %v1349, %v1347
        %v1351 = vclz %v1350
        %v1352 = vsub.s32 %v1351, 2
        %vm1353 = vcmp.gt.s32.totalorder 0, %v1352
        %v1354 = vsel %vm1353, 0, %v1352
        %v1355 = vsub.s32 32, %v1354
        %v1356 = vshll.u32 %v1347, %v1354
        %v1357 = vshrl.u32 %v1339, %v1355
        %v1358 = vor.u32 %v1356, %v1357
        %v1359 = vsub.s32 4294967266, %v1354
        %v1360 = vadd.s32 %v1359, 127
        %v1361 = vshll.u32 %v1360, 23
        %v1362 = vor.u32 4788187, %v1361
        %v1363 = vand.u32 2147483647, %v1362
        %v1365 = vcvt.s32.f32 %v1358
        %v1366 = vmul.f32 %v1365, %v1363
        %v1367 = vxor.u32 %v1366, 2147483648
        %v1368 = vsel %vm1285, %v1367, %v1366
        %v1369 = vsub.s32 4, %v1345
        %v1370 = vsel %vm1285, %v1369, %v1345
        %v1371 = vsel %vm1284, %v1172, %v1368
        %v1372 = vsel %vm1284, 0, %v1370
        %v1373 = vcosq.f32.pop %v1371
        %v1374 = vsinq.f32.pop %v1371
        %vm1375 = vweird.f32 %v1172
        %v1376 = vadd.s32 %v1372, 3
        %v1377 = vand.u32 %v1376, 3
        %vm1378 = vcmp.lt.s32.totalorder %v1377, 2
        %vm1379 = vcmp.eq.s32.totalorder %v1377, 0
        %v1380 = vxor.u32 %v1374, 2147483648
        %v1381 = vsel %vm1379, %v1373, %v1380
        %vm1382 = vcmp.eq.s32.totalorder %v1377, 2
        %v1383 = vxor.u32 %v1373, 2147483648
        %v1384 = vsel %vm1382, %v1383, %v1374
        %v1385 = vsel %vm1378, %v1381, %v1384
        %v1386 = vsel %vm1375, nan, %v1385
        %v1387 = vand.u32 2147483647, %v1173
        %vm1388 = vcmp.le.f32.partialorder %v1387, 0.7853982
        %vm1389 = vcmp.lt.s32.totalorder %v1173, 0
        %v1390 = vand.u32 %v1173, 2139095040
        %v1391 = vshrl.u32 %v1390, 23
        %v1392 = vsub.s32 %v1391, 127
        %v1393 = vand.u32 2147483647, %v1173
        %v1394 = vand.u32 %v1393, 8388607
        %v1395 = vor.u32 %v1394, 8388608
        %v1396 = vsub.s32 0, %v1395
        %v1397 = vadd.s32 %v1392, 1
        %vm1398 = vcmp.gt.s32.totalorder %v1397, 0
        %v1399 = vsel %vm1398, %v1397, 0
        %v1400 = vshrl.u32 %v1399, 5
        %v1401 = vand.u32 %v1399, 31
        %v1402 = vsub.s32 32, %v1401
        %v1403 = vshrl.u32 683565275, %v1402
        %v1404 = vshll.u32 683565275, %v1401
        %v1405 = vshrl.u32 2475754826, %v1402
        %v1406 = vor.u32 %v1404, %v1405
        %v1407 = vshll.u32 2475754826, %v1401
        %v1408 = vshrl.u32 2131351028, %v1402
        %v1409 = vor.u32 %v1407, %v1408
        %v1410 = vshll.u32 2131351028, %v1401
        %v1411 = vshrl.u32 2102212464, %v1402
        %v1412 = vor.u32 %v1410, %v1411
        %v1413 = vshll.u32 2102212464, %v1401
        %v1414 = vshrl.u32 920167782, %v1402
        %v1415 = vor.u32 %v1413, %v1414
        %v1416 = vshll.u32 920167782, %v1401
        %v1417 = vshrl.u32 1326507024, %v1402
        %v1418 = vor.u32 %v1416, %v1417
        %vm1419 = vcmp.lt.s32.totalorder %v1400, 1
        %vm1420 = vcmp.lt.s32.totalorder %v1400, 2
        %vm1421 = vcmp.lt.s32.totalorder %v1400, 3
        %vm1422 = vcmp.lt.s32.totalorder %v1400, 4
        %v1423 = vsel %vm1419, %v1403, %v1406
        %v1424 = vsel %vm1422, %v1412, 2102212464
        %v1425 = vsel %vm1421, %v1409, %v1424
        %v1426 = vsel %vm1420, %v1423, %v1425
        %v1427 = vsel %vm1419, %v1406, %v1409
        %v1428 = vsel %vm1422, %v1415, 920167782
        %v1429 = vsel %vm1421, %v1412, %v1428
        %v1430 = vsel %vm1420, %v1427, %v1429
        %v1431 = vsel %vm1419, %v1409, %v1412
        %v1432 = vsel %vm1422, %v1418, 1326507024
        %v1433 = vsel %vm1421, %v1415, %v1432
        %v1434 = vsel %vm1420, %v1431, %v1433
        %v1435 = vshll.u32 %v1395, 8
        %v1436 = vmul.u32.u64.compose %v1435, %v1434
        %v1437 = vextract.low.u32 %v1436
        %v1438 = vextract.high.u32 %v1436
        %v1439 = vmul.u32.u64.compose %v1435, %v1430
        %v1440 = vextract.low.u32 %v1439
        %v1441 = vextract.high.u32 %v1439
        %v1442 = vmul.u32 %v1435, %v1426
        %v1443 = vadd.s32 %v1438, %v1440
        %vm1444 = vc.u32 %v1438, %v1440
        %v1445 = vadd.s32 %v1441, 1
        %v1446 = vsel %vm1444, %v1445, %v1441
        %v1447 = vadd.s32 %v1442, %v1446
        %v1448 = vadd.s32 %v1447, 536870912
        %v1449 = vshrl.u32 %v1448, 30
        %v1450 = vshll.u32 %v1449, 30
        %v1451 = vsub.s32 %v1447, %v1450
        %vm1452 = vcmp.lt.s32.totalorder %v1451, 0
        %v1453 = vsub.s32 0, %v1451
        %v1454 = vsel %vm1452, %v1453, %v1451
        %v1455 = vclz %v1454
        %v1456 = vsub.s32 %v1455, 2
        %vm1457 = vcmp.gt.s32.totalorder 0, %v1456
        %v1458 = vsel %vm1457, 0, %v1456
        %v1459 = vsub.s32 32, %v1458
        %v1460 = vshll.u32 %v1451, %v1458
        %v1461 = vshrl.u32 %v1443, %v1459
        %v1462 = vor.u32 %v1460, %v1461
        %v1463 = vsub.s32 4294967266, %v1458
        %v1464 = vadd.s32 %v1463, 127
        %v1465 = vshll.u32 %v1464, 23
        %v1466 = vor.u32 4788187, %v1465
        %v1467 = vand.u32 2147483647, %v1466
        %v1469 = vcvt.s32.f32 %v1462
        %v1470 = vmul.f32 %v1469, %v1467
        %v1471 = vxor.u32 %v1470, 2147483648
        %v1472 = vsel %vm1389, %v1471, %v1470
        %v1473 = vsub.s32 4, %v1449
        %v1474 = vsel %vm1389, %v1473, %v1449
        %v1475 = vsel %vm1388, %v1173, %v1472
        %v1476 = vsel %vm1388, 0, %v1474
        %v1477 = vcosq.f32.pop %v1475
        %v1478 = vsinq.f32.pop %v1475
        %vm1479 = vweird.f32 %v1173
        %v1480 = vadd.s32 %v1476, 3
        %v1481 = vand.u32 %v1480, 3
        %vm1482 = vcmp.lt.s32.totalorder %v1481, 2
        %vm1483 = vcmp.eq.s32.totalorder %v1481, 0
        %v1484 = vxor.u32 %v1478, 2147483648
        %v1485 = vsel %vm1483, %v1477, %v1484
        %vm1486 = vcmp.eq.s32.totalorder %v1481, 2
        %v1487 = vxor.u32 %v1477, 2147483648
        %v1488 = vsel %vm1486, %v1487, %v1478
        %v1489 = vsel %vm1482, %v1485, %v1488
        %v1490 = vsel %vm1479, nan, %v1489
        %v1491 = vand.u32 2147483647, %v1174
        %vm1492 = vcmp.le.f32.partialorder %v1491, 0.7853982
        %vm1493 = vcmp.lt.s32.totalorder %v1174, 0
        %v1494 = vand.u32 %v1174, 2139095040
        %v1495 = vshrl.u32 %v1494, 23
        %v1496 = vsub.s32 %v1495, 127
        %v1497 = vand.u32 2147483647, %v1174
        %v1498 = vand.u32 %v1497, 8388607
        %v1499 = vor.u32 %v1498, 8388608
        %v1500 = vsub.s32 0, %v1499
        %v1501 = vadd.s32 %v1496, 1
        %vm1502 = vcmp.gt.s32.totalorder %v1501, 0
        %v1503 = vsel %vm1502, %v1501, 0
        %v1504 = vshrl.u32 %v1503, 5
        %v1505 = vand.u32 %v1503, 31
        %v1506 = vsub.s32 32, %v1505
        %v1507 = vshrl.u32 683565275, %v1506
        %v1508 = vshll.u32 683565275, %v1505
        %v1509 = vshrl.u32 2475754826, %v1506
        %v1510 = vor.u32 %v1508, %v1509
        %v1511 = vshll.u32 2475754826, %v1505
        %v1512 = vshrl.u32 2131351028, %v1506
        %v1513 = vor.u32 %v1511, %v1512
        %v1514 = vshll.u32 2131351028, %v1505
        %v1515 = vshrl.u32 2102212464, %v1506
        %v1516 = vor.u32 %v1514, %v1515
        %v1517 = vshll.u32 2102212464, %v1505
        %v1518 = vshrl.u32 920167782, %v1506
        %v1519 = vor.u32 %v1517, %v1518
        %v1520 = vshll.u32 920167782, %v1505
        %v1521 = vshrl.u32 1326507024, %v1506
        %v1522 = vor.u32 %v1520, %v1521
        %vm1523 = vcmp.lt.s32.totalorder %v1504, 1
        %vm1524 = vcmp.lt.s32.totalorder %v1504, 2
        %vm1525 = vcmp.lt.s32.totalorder %v1504, 3
        %vm1526 = vcmp.lt.s32.totalorder %v1504, 4
        %v1527 = vsel %vm1523, %v1507, %v1510
        %v1528 = vsel %vm1526, %v1516, 2102212464
        %v1529 = vsel %vm1525, %v1513, %v1528
        %v1530 = vsel %vm1524, %v1527, %v1529
        %v1531 = vsel %vm1523, %v1510, %v1513
        %v1532 = vsel %vm1526, %v1519, 920167782
        %v1533 = vsel %vm1525, %v1516, %v1532
        %v1534 = vsel %vm1524, %v1531, %v1533
        %v1535 = vsel %vm1523, %v1513, %v1516
        %v1536 = vsel %vm1526, %v1522, 1326507024
        %v1537 = vsel %vm1525, %v1519, %v1536
        %v1538 = vsel %vm1524, %v1535, %v1537
        %v1539 = vshll.u32 %v1499, 8
        %v1540 = vmul.u32.u64.compose %v1539, %v1538
        %v1541 = vextract.low.u32 %v1540
        %v1542 = vextract.high.u32 %v1540
        %v1543 = vmul.u32.u64.compose %v1539, %v1534
        %v1544 = vextract.low.u32 %v1543
        %v1545 = vextract.high.u32 %v1543
        %v1546 = vmul.u32 %v1539, %v1530
        %v1547 = vadd.s32 %v1542, %v1544
        %vm1548 = vc.u32 %v1542, %v1544
        %v1549 = vadd.s32 %v1545, 1
        %v1550 = vsel %vm1548, %v1549, %v1545
        %v1551 = vadd.s32 %v1546, %v1550
        %v1552 = vadd.s32 %v1551, 536870912
        %v1553 = vshrl.u32 %v1552, 30
        %v1554 = vshll.u32 %v1553, 30
        %v1555 = vsub.s32 %v1551, %v1554
        %vm1556 = vcmp.lt.s32.totalorder %v1555, 0
        %v1557 = vsub.s32 0, %v1555
        %v1558 = vsel %vm1556, %v1557, %v1555
        %v1559 = vclz %v1558
        %v1560 = vsub.s32 %v1559, 2
        %vm1561 = vcmp.gt.s32.totalorder 0, %v1560
        %v1562 = vsel %vm1561, 0, %v1560
        %v1563 = vsub.s32 32, %v1562
        %v1564 = vshll.u32 %v1555, %v1562
        %v1565 = vshrl.u32 %v1547, %v1563
        %v1566 = vor.u32 %v1564, %v1565
        %v1567 = vsub.s32 4294967266, %v1562
        %v1568 = vadd.s32 %v1567, 127
        %v1569 = vshll.u32 %v1568, 23
        %v1570 = vor.u32 4788187, %v1569
        %v1571 = vand.u32 2147483647, %v1570
        %v1573 = vcvt.s32.f32 %v1566
        %v1574 = vmul.f32 %v1573, %v1571
        %v1575 = vxor.u32 %v1574, 2147483648
        %v1576 = vsel %vm1493, %v1575, %v1574
        %v1577 = vsub.s32 4, %v1553
        %v1578 = vsel %vm1493, %v1577, %v1553
        %v1579 = vsel %vm1492, %v1174, %v1576
        %v1580 = vsel %vm1492, 0, %v1578
        %v1581 = vcosq.f32.pop %v1579
        %v1582 = vsinq.f32.pop %v1579
        %vm1583 = vweird.f32 %v1174
        %v1584 = vadd.s32 %v1580, 3
        %v1585 = vand.u32 %v1584, 3
        %vm1586 = vcmp.lt.s32.totalorder %v1585, 2
        %vm1587 = vcmp.eq.s32.totalorder %v1585, 0
        %v1588 = vxor.u32 %v1582, 2147483648
        %v1589 = vsel %vm1587, %v1581, %v1588
        %vm1590 = vcmp.eq.s32.totalorder %v1585, 2
        %v1591 = vxor.u32 %v1581, 2147483648
        %v1592 = vsel %vm1590, %v1591, %v1582
        %v1593 = vsel %vm1586, %v1589, %v1592
        %v1594 = vsel %vm1583, nan, %v1593
        %v1595 = vand.u32 2147483647, %v1175
        %vm1596 = vcmp.le.f32.partialorder %v1595, 0.7853982
        %vm1597 = vcmp.lt.s32.totalorder %v1175, 0
        %v1598 = vand.u32 %v1175, 2139095040
        %v1599 = vshrl.u32 %v1598, 23
        %v1600 = vsub.s32 %v1599, 127
        %v1601 = vand.u32 2147483647, %v1175
        %v1602 = vand.u32 %v1601, 8388607
        %v1603 = vor.u32 %v1602, 8388608
        %v1604 = vsub.s32 0, %v1603
        %v1605 = vadd.s32 %v1600, 1
        %vm1606 = vcmp.gt.s32.totalorder %v1605, 0
        %v1607 = vsel %vm1606, %v1605, 0
        %v1608 = vshrl.u32 %v1607, 5
        %v1609 = vand.u32 %v1607, 31
        %v1610 = vsub.s32 32, %v1609
        %v1611 = vshrl.u32 683565275, %v1610
        %v1612 = vshll.u32 683565275, %v1609
        %v1613 = vshrl.u32 2475754826, %v1610
        %v1614 = vor.u32 %v1612, %v1613
        %v1615 = vshll.u32 2475754826, %v1609
        %v1616 = vshrl.u32 2131351028, %v1610
        %v1617 = vor.u32 %v1615, %v1616
        %v1618 = vshll.u32 2131351028, %v1609
        %v1619 = vshrl.u32 2102212464, %v1610
        %v1620 = vor.u32 %v1618, %v1619
        %v1621 = vshll.u32 2102212464, %v1609
        %v1622 = vshrl.u32 920167782, %v1610
        %v1623 = vor.u32 %v1621, %v1622
        %v1624 = vshll.u32 920167782, %v1609
        %v1625 = vshrl.u32 1326507024, %v1610
        %v1626 = vor.u32 %v1624, %v1625
        %vm1627 = vcmp.lt.s32.totalorder %v1608, 1
        %vm1628 = vcmp.lt.s32.totalorder %v1608, 2
        %vm1629 = vcmp.lt.s32.totalorder %v1608, 3
        %vm1630 = vcmp.lt.s32.totalorder %v1608, 4
        %v1631 = vsel %vm1627, %v1611, %v1614
        %v1632 = vsel %vm1630, %v1620, 2102212464
        %v1633 = vsel %vm1629, %v1617, %v1632
        %v1634 = vsel %vm1628, %v1631, %v1633
        %v1635 = vsel %vm1627, %v1614, %v1617
        %v1636 = vsel %vm1630, %v1623, 920167782
        %v1637 = vsel %vm1629, %v1620, %v1636
        %v1638 = vsel %vm1628, %v1635, %v1637
        %v1639 = vsel %vm1627, %v1617, %v1620
        %v1640 = vsel %vm1630, %v1626, 1326507024
        %v1641 = vsel %vm1629, %v1623, %v1640
        %v1642 = vsel %vm1628, %v1639, %v1641
        %v1643 = vshll.u32 %v1603, 8
        %v1644 = vmul.u32.u64.compose %v1643, %v1642
        %v1645 = vextract.low.u32 %v1644
        %v1646 = vextract.high.u32 %v1644
        %v1647 = vmul.u32.u64.compose %v1643, %v1638
        %v1648 = vextract.low.u32 %v1647
        %v1649 = vextract.high.u32 %v1647
        %v1650 = vmul.u32 %v1643, %v1634
        %v1651 = vadd.s32 %v1646, %v1648
        %vm1652 = vc.u32 %v1646, %v1648
        %v1653 = vadd.s32 %v1649, 1
        %v1654 = vsel %vm1652, %v1653, %v1649
        %v1655 = vadd.s32 %v1650, %v1654
        %v1656 = vadd.s32 %v1655, 536870912
        %v1657 = vshrl.u32 %v1656, 30
        %v1658 = vshll.u32 %v1657, 30
        %v1659 = vsub.s32 %v1655, %v1658
        %vm1660 = vcmp.lt.s32.totalorder %v1659, 0
        %v1661 = vsub.s32 0, %v1659
        %v1662 = vsel %vm1660, %v1661, %v1659
        %v1663 = vclz %v1662
        %v1664 = vsub.s32 %v1663, 2
        %vm1665 = vcmp.gt.s32.totalorder 0, %v1664
        %v1666 = vsel %vm1665, 0, %v1664
        %v1667 = vsub.s32 32, %v1666
        %v1668 = vshll.u32 %v1659, %v1666
        %v1669 = vshrl.u32 %v1651, %v1667
        %v1670 = vor.u32 %v1668, %v1669
        %v1671 = vsub.s32 4294967266, %v1666
        %v1672 = vadd.s32 %v1671, 127
        %v1673 = vshll.u32 %v1672, 23
        %v1674 = vor.u32 4788187, %v1673
        %v1675 = vand.u32 2147483647, %v1674
        %v1677 = vcvt.s32.f32 %v1670
        %v1678 = vmul.f32 %v1677, %v1675
        %v1679 = vxor.u32 %v1678, 2147483648
        %v1680 = vsel %vm1597, %v1679, %v1678
        %v1681 = vsub.s32 4, %v1657
        %v1682 = vsel %vm1597, %v1681, %v1657
        %v1683 = vsel %vm1596, %v1175, %v1680
        %v1684 = vsel %vm1596, 0, %v1682
        %v1685 = vcosq.f32.pop %v1683
        %v1686 = vsinq.f32.pop %v1683
        %vm1687 = vweird.f32 %v1175
        %v1688 = vadd.s32 %v1684, 3
        %v1689 = vand.u32 %v1688, 3
        %vm1690 = vcmp.lt.s32.totalorder %v1689, 2
        %vm1691 = vcmp.eq.s32.totalorder %v1689, 0
        %v1692 = vxor.u32 %v1686, 2147483648
        %v1693 = vsel %vm1691, %v1685, %v1692
        %vm1694 = vcmp.eq.s32.totalorder %v1689, 2
        %v1695 = vxor.u32 %v1685, 2147483648
        %v1696 = vsel %vm1694, %v1695, %v1686
        %v1697 = vsel %vm1690, %v1693, %v1696
        %v1698 = vsel %vm1687, nan, %v1697
        %v1699 = vand.u32 2147483647, %v1176
        %vm1700 = vcmp.le.f32.partialorder %v1699, 0.7853982
        %vm1701 = vcmp.lt.s32.totalorder %v1176, 0
        %v1702 = vand.u32 %v1176, 2139095040
        %v1703 = vshrl.u32 %v1702, 23
        %v1704 = vsub.s32 %v1703, 127
        %v1705 = vand.u32 2147483647, %v1176
        %v1706 = vand.u32 %v1705, 8388607
        %v1707 = vor.u32 %v1706, 8388608
        %v1708 = vsub.s32 0, %v1707
        %v1709 = vadd.s32 %v1704, 1
        %vm1710 = vcmp.gt.s32.totalorder %v1709, 0
        %v1711 = vsel %vm1710, %v1709, 0
        %v1712 = vshrl.u32 %v1711, 5
        %v1713 = vand.u32 %v1711, 31
        %v1714 = vsub.s32 32, %v1713
        %v1715 = vshrl.u32 683565275, %v1714
        %v1716 = vshll.u32 683565275, %v1713
        %v1717 = vshrl.u32 2475754826, %v1714
        %v1718 = vor.u32 %v1716, %v1717
        %v1719 = vshll.u32 2475754826, %v1713
        %v1720 = vshrl.u32 2131351028, %v1714
        %v1721 = vor.u32 %v1719, %v1720
        %v1722 = vshll.u32 2131351028, %v1713
        %v1723 = vshrl.u32 2102212464, %v1714
        %v1724 = vor.u32 %v1722, %v1723
        %v1725 = vshll.u32 2102212464, %v1713
        %v1726 = vshrl.u32 920167782, %v1714
        %v1727 = vor.u32 %v1725, %v1726
        %v1728 = vshll.u32 920167782, %v1713
        %v1729 = vshrl.u32 1326507024, %v1714
        %v1730 = vor.u32 %v1728, %v1729
        %vm1731 = vcmp.lt.s32.totalorder %v1712, 1
        %vm1732 = vcmp.lt.s32.totalorder %v1712, 2
        %vm1733 = vcmp.lt.s32.totalorder %v1712, 3
        %vm1734 = vcmp.lt.s32.totalorder %v1712, 4
        %v1735 = vsel %vm1731, %v1715, %v1718
        %v1736 = vsel %vm1734, %v1724, 2102212464
        %v1737 = vsel %vm1733, %v1721, %v1736
        %v1738 = vsel %vm1732, %v1735, %v1737
        %v1739 = vsel %vm1731, %v1718, %v1721
        %v1740 = vsel %vm1734, %v1727, 920167782
        %v1741 = vsel %vm1733, %v1724, %v1740
        %v1742 = vsel %vm1732, %v1739, %v1741
        %v1743 = vsel %vm1731, %v1721, %v1724
        %v1744 = vsel %vm1734, %v1730, 1326507024
        %v1745 = vsel %vm1733, %v1727, %v1744
        %v1746 = vsel %vm1732, %v1743, %v1745
        %v1747 = vshll.u32 %v1707, 8
        %v1748 = vmul.u32.u64.compose %v1747, %v1746
        %v1749 = vextract.low.u32 %v1748
        %v1750 = vextract.high.u32 %v1748
        %v1751 = vmul.u32.u64.compose %v1747, %v1742
        %v1752 = vextract.low.u32 %v1751
        %v1753 = vextract.high.u32 %v1751
        %v1754 = vmul.u32 %v1747, %v1738
        %v1755 = vadd.s32 %v1750, %v1752
        %vm1756 = vc.u32 %v1750, %v1752
        %v1757 = vadd.s32 %v1753, 1
        %v1758 = vsel %vm1756, %v1757, %v1753
        %v1759 = vadd.s32 %v1754, %v1758
        %v1760 = vadd.s32 %v1759, 536870912
        %v1761 = vshrl.u32 %v1760, 30
        %v1762 = vshll.u32 %v1761, 30
        %v1763 = vsub.s32 %v1759, %v1762
        %vm1764 = vcmp.lt.s32.totalorder %v1763, 0
        %v1765 = vsub.s32 0, %v1763
        %v1766 = vsel %vm1764, %v1765, %v1763
        %v1767 = vclz %v1766
        %v1768 = vsub.s32 %v1767, 2
        %vm1769 = vcmp.gt.s32.totalorder 0, %v1768
        %v1770 = vsel %vm1769, 0, %v1768
        %v1771 = vsub.s32 32, %v1770
        %v1772 = vshll.u32 %v1763, %v1770
        %v1773 = vshrl.u32 %v1755, %v1771
        %v1774 = vor.u32 %v1772, %v1773
        %v1775 = vsub.s32 4294967266, %v1770
        %v1776 = vadd.s32 %v1775, 127
        %v1777 = vshll.u32 %v1776, 23
        %v1778 = vor.u32 4788187, %v1777
        %v1779 = vand.u32 2147483647, %v1778
        %v1781 = vcvt.s32.f32 %v1774
        %v1782 = vmul.f32 %v1781, %v1779
        %v1783 = vxor.u32 %v1782, 2147483648
        %v1784 = vsel %vm1701, %v1783, %v1782
        %v1785 = vsub.s32 4, %v1761
        %v1786 = vsel %vm1701, %v1785, %v1761
        %v1787 = vsel %vm1700, %v1176, %v1784
        %v1788 = vsel %vm1700, 0, %v1786
        %v1789 = vcosq.f32.pop %v1787
        %v1790 = vsinq.f32.pop %v1787
        %vm1791 = vweird.f32 %v1176
        %v1792 = vadd.s32 %v1788, 3
        %v1793 = vand.u32 %v1792, 3
        %vm1794 = vcmp.lt.s32.totalorder %v1793, 2
        %vm1795 = vcmp.eq.s32.totalorder %v1793, 0
        %v1796 = vxor.u32 %v1790, 2147483648
        %v1797 = vsel %vm1795, %v1789, %v1796
        %vm1798 = vcmp.eq.s32.totalorder %v1793, 2
        %v1799 = vxor.u32 %v1789, 2147483648
        %v1800 = vsel %vm1798, %v1799, %v1790
        %v1801 = vsel %vm1794, %v1797, %v1800
        %v1802 = vsel %vm1791, nan, %v1801
        %v1803 = vand.u32 2147483647, %v1177
        %vm1804 = vcmp.le.f32.partialorder %v1803, 0.7853982
        %vm1805 = vcmp.lt.s32.totalorder %v1177, 0
        %v1806 = vand.u32 %v1177, 2139095040
        %v1807 = vshrl.u32 %v1806, 23
        %v1808 = vsub.s32 %v1807, 127
        %v1809 = vand.u32 2147483647, %v1177
        %v1810 = vand.u32 %v1809, 8388607
        %v1811 = vor.u32 %v1810, 8388608
        %v1812 = vsub.s32 0, %v1811
        %v1813 = vadd.s32 %v1808, 1
        %vm1814 = vcmp.gt.s32.totalorder %v1813, 0
        %v1815 = vsel %vm1814, %v1813, 0
        %v1816 = vshrl.u32 %v1815, 5
        %v1817 = vand.u32 %v1815, 31
        %v1818 = vsub.s32 32, %v1817
        %v1819 = vshrl.u32 683565275, %v1818
        %v1820 = vshll.u32 683565275, %v1817
        %v1821 = vshrl.u32 2475754826, %v1818
        %v1822 = vor.u32 %v1820, %v1821
        %v1823 = vshll.u32 2475754826, %v1817
        %v1824 = vshrl.u32 2131351028, %v1818
        %v1825 = vor.u32 %v1823, %v1824
        %v1826 = vshll.u32 2131351028, %v1817
        %v1827 = vshrl.u32 2102212464, %v1818
        %v1828 = vor.u32 %v1826, %v1827
        %v1829 = vshll.u32 2102212464, %v1817
        %v1830 = vshrl.u32 920167782, %v1818
        %v1831 = vor.u32 %v1829, %v1830
        %v1832 = vshll.u32 920167782, %v1817
        %v1833 = vshrl.u32 1326507024, %v1818
        %v1834 = vor.u32 %v1832, %v1833
        %vm1835 = vcmp.lt.s32.totalorder %v1816, 1
        %vm1836 = vcmp.lt.s32.totalorder %v1816, 2
        %vm1837 = vcmp.lt.s32.totalorder %v1816, 3
        %vm1838 = vcmp.lt.s32.totalorder %v1816, 4
        %v1839 = vsel %vm1835, %v1819, %v1822
        %v1840 = vsel %vm1838, %v1828, 2102212464
        %v1841 = vsel %vm1837, %v1825, %v1840
        %v1842 = vsel %vm1836, %v1839, %v1841
        %v1843 = vsel %vm1835, %v1822, %v1825
        %v1844 = vsel %vm1838, %v1831, 920167782
        %v1845 = vsel %vm1837, %v1828, %v1844
        %v1846 = vsel %vm1836, %v1843, %v1845
        %v1847 = vsel %vm1835, %v1825, %v1828
        %v1848 = vsel %vm1838, %v1834, 1326507024
        %v1849 = vsel %vm1837, %v1831, %v1848
        %v1850 = vsel %vm1836, %v1847, %v1849
        %v1851 = vshll.u32 %v1811, 8
        %v1852 = vmul.u32.u64.compose %v1851, %v1850
        %v1853 = vextract.low.u32 %v1852
        %v1854 = vextract.high.u32 %v1852
        %v1855 = vmul.u32.u64.compose %v1851, %v1846
        %v1856 = vextract.low.u32 %v1855
        %v1857 = vextract.high.u32 %v1855
        %v1858 = vmul.u32 %v1851, %v1842
        %v1859 = vadd.s32 %v1854, %v1856
        %vm1860 = vc.u32 %v1854, %v1856
        %v1861 = vadd.s32 %v1857, 1
        %v1862 = vsel %vm1860, %v1861, %v1857
        %v1863 = vadd.s32 %v1858, %v1862
        %v1864 = vadd.s32 %v1863, 536870912
        %v1865 = vshrl.u32 %v1864, 30
        %v1866 = vshll.u32 %v1865, 30
        %v1867 = vsub.s32 %v1863, %v1866
        %vm1868 = vcmp.lt.s32.totalorder %v1867, 0
        %v1869 = vsub.s32 0, %v1867
        %v1870 = vsel %vm1868, %v1869, %v1867
        %v1871 = vclz %v1870
        %v1872 = vsub.s32 %v1871, 2
        %vm1873 = vcmp.gt.s32.totalorder 0, %v1872
        %v1874 = vsel %vm1873, 0, %v1872
        %v1875 = vsub.s32 32, %v1874
        %v1876 = vshll.u32 %v1867, %v1874
        %v1877 = vshrl.u32 %v1859, %v1875
        %v1878 = vor.u32 %v1876, %v1877
        %v1879 = vsub.s32 4294967266, %v1874
        %v1880 = vadd.s32 %v1879, 127
        %v1881 = vshll.u32 %v1880, 23
        %v1882 = vor.u32 4788187, %v1881
        %v1883 = vand.u32 2147483647, %v1882
        %v1885 = vcvt.s32.f32 %v1878
        %v1886 = vmul.f32 %v1885, %v1883
        %v1887 = vxor.u32 %v1886, 2147483648
        %v1888 = vsel %vm1805, %v1887, %v1886
        %v1889 = vsub.s32 4, %v1865
        %v1890 = vsel %vm1805, %v1889, %v1865
        %v1891 = vsel %vm1804, %v1177, %v1888
        %v1892 = vsel %vm1804, 0, %v1890
        %v1893 = vcosq.f32.pop %v1891
        %v1894 = vsinq.f32.pop %v1891
        %vm1895 = vweird.f32 %v1177
        %v1896 = vadd.s32 %v1892, 3
        %v1897 = vand.u32 %v1896, 3
        %vm1898 = vcmp.lt.s32.totalorder %v1897, 2
        %vm1899 = vcmp.eq.s32.totalorder %v1897, 0
        %v1900 = vxor.u32 %v1894, 2147483648
        %v1901 = vsel %vm1899, %v1893, %v1900
        %vm1902 = vcmp.eq.s32.totalorder %v1897, 2
        %v1903 = vxor.u32 %v1893, 2147483648
        %v1904 = vsel %vm1902, %v1903, %v1894
        %v1905 = vsel %vm1898, %v1901, %v1904
        %v1906 = vsel %vm1895, nan, %v1905
        %v1907 = vand.u32 2147483647, %v1178
        %vm1908 = vcmp.le.f32.partialorder %v1907, 0.7853982
        %vm1909 = vcmp.lt.s32.totalorder %v1178, 0
        %v1910 = vand.u32 %v1178, 2139095040
        %v1911 = vshrl.u32 %v1910, 23
        %v1912 = vsub.s32 %v1911, 127
        %v1913 = vand.u32 2147483647, %v1178
        %v1914 = vand.u32 %v1913, 8388607
        %v1915 = vor.u32 %v1914, 8388608
        %v1916 = vsub.s32 0, %v1915
        %v1917 = vadd.s32 %v1912, 1
        %vm1918 = vcmp.gt.s32.totalorder %v1917, 0
        %v1919 = vsel %vm1918, %v1917, 0
        %v1920 = vshrl.u32 %v1919, 5
        %v1921 = vand.u32 %v1919, 31
        %v1922 = vsub.s32 32, %v1921
        %v1923 = vshrl.u32 683565275, %v1922
        %v1924 = vshll.u32 683565275, %v1921
        %v1925 = vshrl.u32 2475754826, %v1922
        %v1926 = vor.u32 %v1924, %v1925
        %v1927 = vshll.u32 2475754826, %v1921
        %v1928 = vshrl.u32 2131351028, %v1922
        %v1929 = vor.u32 %v1927, %v1928
        %v1930 = vshll.u32 2131351028, %v1921
        %v1931 = vshrl.u32 2102212464, %v1922
        %v1932 = vor.u32 %v1930, %v1931
        %v1933 = vshll.u32 2102212464, %v1921
        %v1934 = vshrl.u32 920167782, %v1922
        %v1935 = vor.u32 %v1933, %v1934
        %v1936 = vshll.u32 920167782, %v1921
        %v1937 = vshrl.u32 1326507024, %v1922
        %v1938 = vor.u32 %v1936, %v1937
        %vm1939 = vcmp.lt.s32.totalorder %v1920, 1
        %vm1940 = vcmp.lt.s32.totalorder %v1920, 2
        %vm1941 = vcmp.lt.s32.totalorder %v1920, 3
        %vm1942 = vcmp.lt.s32.totalorder %v1920, 4
        %v1943 = vsel %vm1939, %v1923, %v1926
        %v1944 = vsel %vm1942, %v1932, 2102212464
        %v1945 = vsel %vm1941, %v1929, %v1944
        %v1946 = vsel %vm1940, %v1943, %v1945
        %v1947 = vsel %vm1939, %v1926, %v1929
        %v1948 = vsel %vm1942, %v1935, 920167782
        %v1949 = vsel %vm1941, %v1932, %v1948
        %v1950 = vsel %vm1940, %v1947, %v1949
        %v1951 = vsel %vm1939, %v1929, %v1932
        %v1952 = vsel %vm1942, %v1938, 1326507024
        %v1953 = vsel %vm1941, %v1935, %v1952
        %v1954 = vsel %vm1940, %v1951, %v1953
        %v1955 = vshll.u32 %v1915, 8
        %v1956 = vmul.u32.u64.compose %v1955, %v1954
        %v1957 = vextract.low.u32 %v1956
        %v1958 = vextract.high.u32 %v1956
        %v1959 = vmul.u32.u64.compose %v1955, %v1950
        %v1960 = vextract.low.u32 %v1959
        %v1961 = vextract.high.u32 %v1959
        %v1962 = vmul.u32 %v1955, %v1946
        %v1963 = vadd.s32 %v1958, %v1960
        %vm1964 = vc.u32 %v1958, %v1960
        %v1965 = vadd.s32 %v1961, 1
        %v1966 = vsel %vm1964, %v1965, %v1961
        %v1967 = vadd.s32 %v1962, %v1966
        %v1968 = vadd.s32 %v1967, 536870912
        %v1969 = vshrl.u32 %v1968, 30
        %v1970 = vshll.u32 %v1969, 30
        %v1971 = vsub.s32 %v1967, %v1970
        %vm1972 = vcmp.lt.s32.totalorder %v1971, 0
        %v1973 = vsub.s32 0, %v1971
        %v1974 = vsel %vm1972, %v1973, %v1971
        %v1975 = vclz %v1974
        %v1976 = vsub.s32 %v1975, 2
        %vm1977 = vcmp.gt.s32.totalorder 0, %v1976
        %v1978 = vsel %vm1977, 0, %v1976
        %v1979 = vsub.s32 32, %v1978
        %v1980 = vshll.u32 %v1971, %v1978
        %v1981 = vshrl.u32 %v1963, %v1979
        %v1982 = vor.u32 %v1980, %v1981
        %v1983 = vsub.s32 4294967266, %v1978
        %v1984 = vadd.s32 %v1983, 127
        %v1985 = vshll.u32 %v1984, 23
        %v1986 = vor.u32 4788187, %v1985
        %v1987 = vand.u32 2147483647, %v1986
        %v1989 = vcvt.s32.f32 %v1982
        %v1990 = vmul.f32 %v1989, %v1987
        %v1991 = vxor.u32 %v1990, 2147483648
        %v1992 = vsel %vm1909, %v1991, %v1990
        %v1993 = vsub.s32 4, %v1969
        %v1994 = vsel %vm1909, %v1993, %v1969
        %v1995 = vsel %vm1908, %v1178, %v1992
        %v1996 = vsel %vm1908, 0, %v1994
        %v1997 = vcosq.f32.pop %v1995
        %v1998 = vsinq.f32.pop %v1995
        %vm1999 = vweird.f32 %v1178
        %v2000 = vadd.s32 %v1996, 3
        %v2001 = vand.u32 %v2000, 3
        %vm2002 = vcmp.lt.s32.totalorder %v2001, 2
        %vm2003 = vcmp.eq.s32.totalorder %v2001, 0
        %v2004 = vxor.u32 %v1998, 2147483648
        %v2005 = vsel %vm2003, %v1997, %v2004
        %vm2006 = vcmp.eq.s32.totalorder %v2001, 2
        %v2007 = vxor.u32 %v1997, 2147483648
        %v2008 = vsel %vm2006, %v2007, %v1998
        %v2009 = vsel %vm2002, %v2005, %v2008
        %v2010 = vsel %vm1999, nan, %v2009
        %2012 = vset.pattern.permute.xlu0 0
        %2013 = vperm.xlu0 %2012, %v390
        %v2014 = vpop.permute.xlu0 %2013
        %2017 = vset.pattern.permute.xlu0 0
        %2018 = vperm.xlu0 %2017, %v494
        %v2019 = vpop.permute.xlu0 %2018
        %2022 = vset.pattern.permute.xlu0 0
        %2023 = vperm.xlu0 %2022, %v598
        %v2024 = vpop.permute.xlu0 %2023
        %2027 = vset.pattern.permute.xlu0 0
        %2028 = vperm.xlu0 %2027, %v702
        %v2029 = vpop.permute.xlu0 %2028
        %v2031 = vadd.f32 %v1282, %v2014
        %v2032 = vadd.f32 %v1386, %v2014
        %v2033 = vadd.f32 %v1490, %v2019
        %v2034 = vadd.f32 %v1594, %v2019
        %v2035 = vadd.f32 %v1698, %v2024
        %v2036 = vadd.f32 %v1802, %v2024
        %v2037 = vadd.f32 %v1906, %v2029
        %v2038 = vadd.f32 %v2010, %v2029
        %2039 = vst [vmem:[%s189] sm:$0xff] %v2031
        %2040 = vst [vmem:[%s189 + $0x8] sm:$0xff] %v2032
        %2041 = vst [vmem:[%s189 + $0x10] sm:$0xff] %v2033
        %2042 = vst [vmem:[%s189 + $0x18] sm:$0xff] %v2034
        %2043 = vst [vmem:[%s189 + $0x20] sm:$0xff] %v2035
        %2044 = vst [vmem:[%s189 + $0x28] sm:$0xff] %v2036
        %2045 = vst [vmem:[%s189 + $0x30] sm:$0xff] %v2037
        %2046 = vst [vmem:[%s189 + $0x38] sm:$0xff] %v2038
        %s2047 = scalar_lea.vmem %s194, 1
        %v2048 = vld [vmem:[%s2047] ss:$2 sm:$0x3]
        %v2050 = vlaneseq
        %v2051 = vshrl.u32 %v2050, 7
        %v2052 = vsub.s32 0, %v2051
        %v2053 = vrot.slane %v2048, %v2052
        %v2054 = vlaneseq
        %v2055 = vshrl.u32 %v2054, 7
        %v2056 = vsub.s32 1, %v2055
        %v2057 = vrot.slane %v2048, %v2056
        %v2060 = vmul.f32 %v2053, %v1133
        %v2061 = vmul.f32 %v2057, %v1133
        %v2062 = vmul.f32 %v2053, %v1137
        %v2063 = vmul.f32 %v2057, %v1137
        %v2064 = vmul.f32 %v2053, %v1141
        %v2065 = vmul.f32 %v2057, %v1141
        %v2066 = vmul.f32 %v2053, %v1145
        %v2067 = vmul.f32 %v2057, %v1145
        %v2068 = vadd.f32 %v2060, %v1157
        %v2069 = vadd.f32 %v2061, %v1157
        %v2070 = vadd.f32 %v2062, %v1161
        %v2071 = vadd.f32 %v2063, %v1161
        %v2072 = vadd.f32 %v2064, %v1165
        %v2073 = vadd.f32 %v2065, %v1165
        %v2074 = vadd.f32 %v2066, %v1169
        %v2075 = vadd.f32 %v2067, %v1169
        %v2076 = vand.u32 2147483647, %v2068
        %vm2077 = vcmp.le.f32.partialorder %v2076, 0.7853982
        %vm2078 = vcmp.lt.s32.totalorder %v2068, 0
        %v2079 = vand.u32 %v2068, 2139095040
        %v2080 = vshrl.u32 %v2079, 23
        %v2081 = vsub.s32 %v2080, 127
        %v2082 = vand.u32 2147483647, %v2068
        %v2083 = vand.u32 %v2082, 8388607
        %v2084 = vor.u32 %v2083, 8388608
        %v2085 = vsub.s32 0, %v2084
        %v2086 = vadd.s32 %v2081, 1
        %vm2087 = vcmp.gt.s32.totalorder %v2086, 0
        %v2088 = vsel %vm2087, %v2086, 0
        %v2089 = vshrl.u32 %v2088, 5
        %v2090 = vand.u32 %v2088, 31
        %v2091 = vsub.s32 32, %v2090
        %v2092 = vshrl.u32 683565275, %v2091
        %v2093 = vshll.u32 683565275, %v2090
        %v2094 = vshrl.u32 2475754826, %v2091
        %v2095 = vor.u32 %v2093, %v2094
        %v2096 = vshll.u32 2475754826, %v2090
        %v2097 = vshrl.u32 2131351028, %v2091
        %v2098 = vor.u32 %v2096, %v2097
        %v2099 = vshll.u32 2131351028, %v2090
        %v2100 = vshrl.u32 2102212464, %v2091
        %v2101 = vor.u32 %v2099, %v2100
        %v2102 = vshll.u32 2102212464, %v2090
        %v2103 = vshrl.u32 920167782, %v2091
        %v2104 = vor.u32 %v2102, %v2103
        %v2105 = vshll.u32 920167782, %v2090
        %v2106 = vshrl.u32 1326507024, %v2091
        %v2107 = vor.u32 %v2105, %v2106
        %vm2108 = vcmp.lt.s32.totalorder %v2089, 1
        %vm2109 = vcmp.lt.s32.totalorder %v2089, 2
        %vm2110 = vcmp.lt.s32.totalorder %v2089, 3
        %vm2111 = vcmp.lt.s32.totalorder %v2089, 4
        %v2112 = vsel %vm2108, %v2092, %v2095
        %v2113 = vsel %vm2111, %v2101, 2102212464
        %v2114 = vsel %vm2110, %v2098, %v2113
        %v2115 = vsel %vm2109, %v2112, %v2114
        %v2116 = vsel %vm2108, %v2095, %v2098
        %v2117 = vsel %vm2111, %v2104, 920167782
        %v2118 = vsel %vm2110, %v2101, %v2117
        %v2119 = vsel %vm2109, %v2116, %v2118
        %v2120 = vsel %vm2108, %v2098, %v2101
        %v2121 = vsel %vm2111, %v2107, 1326507024
        %v2122 = vsel %vm2110, %v2104, %v2121
        %v2123 = vsel %vm2109, %v2120, %v2122
        %v2124 = vshll.u32 %v2084, 8
        %v2125 = vmul.u32.u64.compose %v2124, %v2123
        %v2126 = vextract.low.u32 %v2125
        %v2127 = vextract.high.u32 %v2125
        %v2128 = vmul.u32.u64.compose %v2124, %v2119
        %v2129 = vextract.low.u32 %v2128
        %v2130 = vextract.high.u32 %v2128
        %v2131 = vmul.u32 %v2124, %v2115
        %v2132 = vadd.s32 %v2127, %v2129
        %vm2133 = vc.u32 %v2127, %v2129
        %v2134 = vadd.s32 %v2130, 1
        %v2135 = vsel %vm2133, %v2134, %v2130
        %v2136 = vadd.s32 %v2131, %v2135
        %v2137 = vadd.s32 %v2136, 536870912
        %v2138 = vshrl.u32 %v2137, 30
        %v2139 = vshll.u32 %v2138, 30
        %v2140 = vsub.s32 %v2136, %v2139
        %vm2141 = vcmp.lt.s32.totalorder %v2140, 0
        %v2142 = vsub.s32 0, %v2140
        %v2143 = vsel %vm2141, %v2142, %v2140
        %v2144 = vclz %v2143
        %v2145 = vsub.s32 %v2144, 2
        %vm2146 = vcmp.gt.s32.totalorder 0, %v2145
        %v2147 = vsel %vm2146, 0, %v2145
        %v2148 = vsub.s32 32, %v2147
        %v2149 = vshll.u32 %v2140, %v2147
        %v2150 = vshrl.u32 %v2132, %v2148
        %v2151 = vor.u32 %v2149, %v2150
        %v2152 = vsub.s32 4294967266, %v2147
        %v2153 = vadd.s32 %v2152, 127
        %v2154 = vshll.u32 %v2153, 23
        %v2155 = vor.u32 4788187, %v2154
        %v2156 = vand.u32 2147483647, %v2155
        %v2158 = vcvt.s32.f32 %v2151
        %v2159 = vmul.f32 %v2158, %v2156
        %v2160 = vxor.u32 %v2159, 2147483648
        %v2161 = vsel %vm2078, %v2160, %v2159
        %v2162 = vsub.s32 4, %v2138
        %v2163 = vsel %vm2078, %v2162, %v2138
        %v2164 = vsel %vm2077, %v2068, %v2161
        %v2165 = vsel %vm2077, 0, %v2163
        %v2166 = vcosq.f32.pop %v2164
        %v2167 = vsinq.f32.pop %v2164
        %vm2168 = vweird.f32 %v2068
        %v2169 = vadd.s32 %v2165, 3
        %v2170 = vand.u32 %v2169, 3
        %vm2171 = vcmp.lt.s32.totalorder %v2170, 2
        %vm2172 = vcmp.eq.s32.totalorder %v2170, 0
        %v2173 = vxor.u32 %v2167, 2147483648
        %v2174 = vsel %vm2172, %v2166, %v2173
        %vm2175 = vcmp.eq.s32.totalorder %v2170, 2
        %v2176 = vxor.u32 %v2166, 2147483648
        %v2177 = vsel %vm2175, %v2176, %v2167
        %v2178 = vsel %vm2171, %v2174, %v2177
        %v2179 = vsel %vm2168, nan, %v2178
        %v2180 = vand.u32 2147483647, %v2069
        %vm2181 = vcmp.le.f32.partialorder %v2180, 0.7853982
        %vm2182 = vcmp.lt.s32.totalorder %v2069, 0
        %v2183 = vand.u32 %v2069, 2139095040
        %v2184 = vshrl.u32 %v2183, 23
        %v2185 = vsub.s32 %v2184, 127
        %v2186 = vand.u32 2147483647, %v2069
        %v2187 = vand.u32 %v2186, 8388607
        %v2188 = vor.u32 %v2187, 8388608
        %v2189 = vsub.s32 0, %v2188
        %v2190 = vadd.s32 %v2185, 1
        %vm2191 = vcmp.gt.s32.totalorder %v2190, 0
        %v2192 = vsel %vm2191, %v2190, 0
        %v2193 = vshrl.u32 %v2192, 5
        %v2194 = vand.u32 %v2192, 31
        %v2195 = vsub.s32 32, %v2194
        %v2196 = vshrl.u32 683565275, %v2195
        %v2197 = vshll.u32 683565275, %v2194
        %v2198 = vshrl.u32 2475754826, %v2195
        %v2199 = vor.u32 %v2197, %v2198
        %v2200 = vshll.u32 2475754826, %v2194
        %v2201 = vshrl.u32 2131351028, %v2195
        %v2202 = vor.u32 %v2200, %v2201
        %v2203 = vshll.u32 2131351028, %v2194
        %v2204 = vshrl.u32 2102212464, %v2195
        %v2205 = vor.u32 %v2203, %v2204
        %v2206 = vshll.u32 2102212464, %v2194
        %v2207 = vshrl.u32 920167782, %v2195
        %v2208 = vor.u32 %v2206, %v2207
        %v2209 = vshll.u32 920167782, %v2194
        %v2210 = vshrl.u32 1326507024, %v2195
        %v2211 = vor.u32 %v2209, %v2210
        %vm2212 = vcmp.lt.s32.totalorder %v2193, 1
        %vm2213 = vcmp.lt.s32.totalorder %v2193, 2
        %vm2214 = vcmp.lt.s32.totalorder %v2193, 3
        %vm2215 = vcmp.lt.s32.totalorder %v2193, 4
        %v2216 = vsel %vm2212, %v2196, %v2199
        %v2217 = vsel %vm2215, %v2205, 2102212464
        %v2218 = vsel %vm2214, %v2202, %v2217
        %v2219 = vsel %vm2213, %v2216, %v2218
        %v2220 = vsel %vm2212, %v2199, %v2202
        %v2221 = vsel %vm2215, %v2208, 920167782
        %v2222 = vsel %vm2214, %v2205, %v2221
        %v2223 = vsel %vm2213, %v2220, %v2222
        %v2224 = vsel %vm2212, %v2202, %v2205
        %v2225 = vsel %vm2215, %v2211, 1326507024
        %v2226 = vsel %vm2214, %v2208, %v2225
        %v2227 = vsel %vm2213, %v2224, %v2226
        %v2228 = vshll.u32 %v2188, 8
        %v2229 = vmul.u32.u64.compose %v2228, %v2227
        %v2230 = vextract.low.u32 %v2229
        %v2231 = vextract.high.u32 %v2229
        %v2232 = vmul.u32.u64.compose %v2228, %v2223
        %v2233 = vextract.low.u32 %v2232
        %v2234 = vextract.high.u32 %v2232
        %v2235 = vmul.u32 %v2228, %v2219
        %v2236 = vadd.s32 %v2231, %v2233
        %vm2237 = vc.u32 %v2231, %v2233
        %v2238 = vadd.s32 %v2234, 1
        %v2239 = vsel %vm2237, %v2238, %v2234
        %v2240 = vadd.s32 %v2235, %v2239
        %v2241 = vadd.s32 %v2240, 536870912
        %v2242 = vshrl.u32 %v2241, 30
        %v2243 = vshll.u32 %v2242, 30
        %v2244 = vsub.s32 %v2240, %v2243
        %vm2245 = vcmp.lt.s32.totalorder %v2244, 0
        %v2246 = vsub.s32 0, %v2244
        %v2247 = vsel %vm2245, %v2246, %v2244
        %v2248 = vclz %v2247
        %v2249 = vsub.s32 %v2248, 2
        %vm2250 = vcmp.gt.s32.totalorder 0, %v2249
        %v2251 = vsel %vm2250, 0, %v2249
        %v2252 = vsub.s32 32, %v2251
        %v2253 = vshll.u32 %v2244, %v2251
        %v2254 = vshrl.u32 %v2236, %v2252
        %v2255 = vor.u32 %v2253, %v2254
        %v2256 = vsub.s32 4294967266, %v2251
        %v2257 = vadd.s32 %v2256, 127
        %v2258 = vshll.u32 %v2257, 23
        %v2259 = vor.u32 4788187, %v2258
        %v2260 = vand.u32 2147483647, %v2259
        %v2262 = vcvt.s32.f32 %v2255
        %v2263 = vmul.f32 %v2262, %v2260
        %v2264 = vxor.u32 %v2263, 2147483648
        %v2265 = vsel %vm2182, %v2264, %v2263
        %v2266 = vsub.s32 4, %v2242
        %v2267 = vsel %vm2182, %v2266, %v2242
        %v2268 = vsel %vm2181, %v2069, %v2265
        %v2269 = vsel %vm2181, 0, %v2267
        %v2270 = vcosq.f32.pop %v2268
        %v2271 = vsinq.f32.pop %v2268
        %vm2272 = vweird.f32 %v2069
        %v2273 = vadd.s32 %v2269, 3
        %v2274 = vand.u32 %v2273, 3
        %vm2275 = vcmp.lt.s32.totalorder %v2274, 2
        %vm2276 = vcmp.eq.s32.totalorder %v2274, 0
        %v2277 = vxor.u32 %v2271, 2147483648
        %v2278 = vsel %vm2276, %v2270, %v2277
        %vm2279 = vcmp.eq.s32.totalorder %v2274, 2
        %v2280 = vxor.u32 %v2270, 2147483648
        %v2281 = vsel %vm2279, %v2280, %v2271
        %v2282 = vsel %vm2275, %v2278, %v2281
        %v2283 = vsel %vm2272, nan, %v2282
        %v2284 = vand.u32 2147483647, %v2070
        %vm2285 = vcmp.le.f32.partialorder %v2284, 0.7853982
        %vm2286 = vcmp.lt.s32.totalorder %v2070, 0
        %v2287 = vand.u32 %v2070, 2139095040
        %v2288 = vshrl.u32 %v2287, 23
        %v2289 = vsub.s32 %v2288, 127
        %v2290 = vand.u32 2147483647, %v2070
        %v2291 = vand.u32 %v2290, 8388607
        %v2292 = vor.u32 %v2291, 8388608
        %v2293 = vsub.s32 0, %v2292
        %v2294 = vadd.s32 %v2289, 1
        %vm2295 = vcmp.gt.s32.totalorder %v2294, 0
        %v2296 = vsel %vm2295, %v2294, 0
        %v2297 = vshrl.u32 %v2296, 5
        %v2298 = vand.u32 %v2296, 31
        %v2299 = vsub.s32 32, %v2298
        %v2300 = vshrl.u32 683565275, %v2299
        %v2301 = vshll.u32 683565275, %v2298
        %v2302 = vshrl.u32 2475754826, %v2299
        %v2303 = vor.u32 %v2301, %v2302
        %v2304 = vshll.u32 2475754826, %v2298
        %v2305 = vshrl.u32 2131351028, %v2299
        %v2306 = vor.u32 %v2304, %v2305
        %v2307 = vshll.u32 2131351028, %v2298
        %v2308 = vshrl.u32 2102212464, %v2299
        %v2309 = vor.u32 %v2307, %v2308
        %v2310 = vshll.u32 2102212464, %v2298
        %v2311 = vshrl.u32 920167782, %v2299
        %v2312 = vor.u32 %v2310, %v2311
        %v2313 = vshll.u32 920167782, %v2298
        %v2314 = vshrl.u32 1326507024, %v2299
        %v2315 = vor.u32 %v2313, %v2314
        %vm2316 = vcmp.lt.s32.totalorder %v2297, 1
        %vm2317 = vcmp.lt.s32.totalorder %v2297, 2
        %vm2318 = vcmp.lt.s32.totalorder %v2297, 3
        %vm2319 = vcmp.lt.s32.totalorder %v2297, 4
        %v2320 = vsel %vm2316, %v2300, %v2303
        %v2321 = vsel %vm2319, %v2309, 2102212464
        %v2322 = vsel %vm2318, %v2306, %v2321
        %v2323 = vsel %vm2317, %v2320, %v2322
        %v2324 = vsel %vm2316, %v2303, %v2306
        %v2325 = vsel %vm2319, %v2312, 920167782
        %v2326 = vsel %vm2318, %v2309, %v2325
        %v2327 = vsel %vm2317, %v2324, %v2326
        %v2328 = vsel %vm2316, %v2306, %v2309
        %v2329 = vsel %vm2319, %v2315, 1326507024
        %v2330 = vsel %vm2318, %v2312, %v2329
        %v2331 = vsel %vm2317, %v2328, %v2330
        %v2332 = vshll.u32 %v2292, 8
        %v2333 = vmul.u32.u64.compose %v2332, %v2331
        %v2334 = vextract.low.u32 %v2333
        %v2335 = vextract.high.u32 %v2333
        %v2336 = vmul.u32.u64.compose %v2332, %v2327
        %v2337 = vextract.low.u32 %v2336
        %v2338 = vextract.high.u32 %v2336
        %v2339 = vmul.u32 %v2332, %v2323
        %v2340 = vadd.s32 %v2335, %v2337
        %vm2341 = vc.u32 %v2335, %v2337
        %v2342 = vadd.s32 %v2338, 1
        %v2343 = vsel %vm2341, %v2342, %v2338
        %v2344 = vadd.s32 %v2339, %v2343
        %v2345 = vadd.s32 %v2344, 536870912
        %v2346 = vshrl.u32 %v2345, 30
        %v2347 = vshll.u32 %v2346, 30
        %v2348 = vsub.s32 %v2344, %v2347
        %vm2349 = vcmp.lt.s32.totalorder %v2348, 0
        %v2350 = vsub.s32 0, %v2348
        %v2351 = vsel %vm2349, %v2350, %v2348
        %v2352 = vclz %v2351
        %v2353 = vsub.s32 %v2352, 2
        %vm2354 = vcmp.gt.s32.totalorder 0, %v2353
        %v2355 = vsel %vm2354, 0, %v2353
        %v2356 = vsub.s32 32, %v2355
        %v2357 = vshll.u32 %v2348, %v2355
        %v2358 = vshrl.u32 %v2340, %v2356
        %v2359 = vor.u32 %v2357, %v2358
        %v2360 = vsub.s32 4294967266, %v2355
        %v2361 = vadd.s32 %v2360, 127
        %v2362 = vshll.u32 %v2361, 23
        %v2363 = vor.u32 4788187, %v2362
        %v2364 = vand.u32 2147483647, %v2363
        %v2366 = vcvt.s32.f32 %v2359
        %v2367 = vmul.f32 %v2366, %v2364
        %v2368 = vxor.u32 %v2367, 2147483648
        %v2369 = vsel %vm2286, %v2368, %v2367
        %v2370 = vsub.s32 4, %v2346
        %v2371 = vsel %vm2286, %v2370, %v2346
        %v2372 = vsel %vm2285, %v2070, %v2369
        %v2373 = vsel %vm2285, 0, %v2371
        %v2374 = vcosq.f32.pop %v2372
        %v2375 = vsinq.f32.pop %v2372
        %vm2376 = vweird.f32 %v2070
        %v2377 = vadd.s32 %v2373, 3
        %v2378 = vand.u32 %v2377, 3
        %vm2379 = vcmp.lt.s32.totalorder %v2378, 2
        %vm2380 = vcmp.eq.s32.totalorder %v2378, 0
        %v2381 = vxor.u32 %v2375, 2147483648
        %v2382 = vsel %vm2380, %v2374, %v2381
        %vm2383 = vcmp.eq.s32.totalorder %v2378, 2
        %v2384 = vxor.u32 %v2374, 2147483648
        %v2385 = vsel %vm2383, %v2384, %v2375
        %v2386 = vsel %vm2379, %v2382, %v2385
        %v2387 = vsel %vm2376, nan, %v2386
        %v2388 = vand.u32 2147483647, %v2071
        %vm2389 = vcmp.le.f32.partialorder %v2388, 0.7853982
        %vm2390 = vcmp.lt.s32.totalorder %v2071, 0
        %v2391 = vand.u32 %v2071, 2139095040
        %v2392 = vshrl.u32 %v2391, 23
        %v2393 = vsub.s32 %v2392, 127
        %v2394 = vand.u32 2147483647, %v2071
        %v2395 = vand.u32 %v2394, 8388607
        %v2396 = vor.u32 %v2395, 8388608
        %v2397 = vsub.s32 0, %v2396
        %v2398 = vadd.s32 %v2393, 1
        %vm2399 = vcmp.gt.s32.totalorder %v2398, 0
        %v2400 = vsel %vm2399, %v2398, 0
        %v2401 = vshrl.u32 %v2400, 5
        %v2402 = vand.u32 %v2400, 31
        %v2403 = vsub.s32 32, %v2402
        %v2404 = vshrl.u32 683565275, %v2403
        %v2405 = vshll.u32 683565275, %v2402
        %v2406 = vshrl.u32 2475754826, %v2403
        %v2407 = vor.u32 %v2405, %v2406
        %v2408 = vshll.u32 2475754826, %v2402
        %v2409 = vshrl.u32 2131351028, %v2403
        %v2410 = vor.u32 %v2408, %v2409
        %v2411 = vshll.u32 2131351028, %v2402
        %v2412 = vshrl.u32 2102212464, %v2403
        %v2413 = vor.u32 %v2411, %v2412
        %v2414 = vshll.u32 2102212464, %v2402
        %v2415 = vshrl.u32 920167782, %v2403
        %v2416 = vor.u32 %v2414, %v2415
        %v2417 = vshll.u32 920167782, %v2402
        %v2418 = vshrl.u32 1326507024, %v2403
        %v2419 = vor.u32 %v2417, %v2418
        %vm2420 = vcmp.lt.s32.totalorder %v2401, 1
        %vm2421 = vcmp.lt.s32.totalorder %v2401, 2
        %vm2422 = vcmp.lt.s32.totalorder %v2401, 3
        %vm2423 = vcmp.lt.s32.totalorder %v2401, 4
        %v2424 = vsel %vm2420, %v2404, %v2407
        %v2425 = vsel %vm2423, %v2413, 2102212464
        %v2426 = vsel %vm2422, %v2410, %v2425
        %v2427 = vsel %vm2421, %v2424, %v2426
        %v2428 = vsel %vm2420, %v2407, %v2410
        %v2429 = vsel %vm2423, %v2416, 920167782
        %v2430 = vsel %vm2422, %v2413, %v2429
        %v2431 = vsel %vm2421, %v2428, %v2430
        %v2432 = vsel %vm2420, %v2410, %v2413
        %v2433 = vsel %vm2423, %v2419, 1326507024
        %v2434 = vsel %vm2422, %v2416, %v2433
        %v2435 = vsel %vm2421, %v2432, %v2434
        %v2436 = vshll.u32 %v2396, 8
        %v2437 = vmul.u32.u64.compose %v2436, %v2435
        %v2438 = vextract.low.u32 %v2437
        %v2439 = vextract.high.u32 %v2437
        %v2440 = vmul.u32.u64.compose %v2436, %v2431
        %v2441 = vextract.low.u32 %v2440
        %v2442 = vextract.high.u32 %v2440
        %v2443 = vmul.u32 %v2436, %v2427
        %v2444 = vadd.s32 %v2439, %v2441
        %vm2445 = vc.u32 %v2439, %v2441
        %v2446 = vadd.s32 %v2442, 1
        %v2447 = vsel %vm2445, %v2446, %v2442
        %v2448 = vadd.s32 %v2443, %v2447
        %v2449 = vadd.s32 %v2448, 536870912
        %v2450 = vshrl.u32 %v2449, 30
        %v2451 = vshll.u32 %v2450, 30
        %v2452 = vsub.s32 %v2448, %v2451
        %vm2453 = vcmp.lt.s32.totalorder %v2452, 0
        %v2454 = vsub.s32 0, %v2452
        %v2455 = vsel %vm2453, %v2454, %v2452
        %v2456 = vclz %v2455
        %v2457 = vsub.s32 %v2456, 2
        %vm2458 = vcmp.gt.s32.totalorder 0, %v2457
        %v2459 = vsel %vm2458, 0, %v2457
        %v2460 = vsub.s32 32, %v2459
        %v2461 = vshll.u32 %v2452, %v2459
        %v2462 = vshrl.u32 %v2444, %v2460
        %v2463 = vor.u32 %v2461, %v2462
        %v2464 = vsub.s32 4294967266, %v2459
        %v2465 = vadd.s32 %v2464, 127
        %v2466 = vshll.u32 %v2465, 23
        %v2467 = vor.u32 4788187, %v2466
        %v2468 = vand.u32 2147483647, %v2467
        %v2470 = vcvt.s32.f32 %v2463
        %v2471 = vmul.f32 %v2470, %v2468
        %v2472 = vxor.u32 %v2471, 2147483648
        %v2473 = vsel %vm2390, %v2472, %v2471
        %v2474 = vsub.s32 4, %v2450
        %v2475 = vsel %vm2390, %v2474, %v2450
        %v2476 = vsel %vm2389, %v2071, %v2473
        %v2477 = vsel %vm2389, 0, %v2475
        %v2478 = vcosq.f32.pop %v2476
        %v2479 = vsinq.f32.pop %v2476
        %vm2480 = vweird.f32 %v2071
        %v2481 = vadd.s32 %v2477, 3
        %v2482 = vand.u32 %v2481, 3
        %vm2483 = vcmp.lt.s32.totalorder %v2482, 2
        %vm2484 = vcmp.eq.s32.totalorder %v2482, 0
        %v2485 = vxor.u32 %v2479, 2147483648
        %v2486 = vsel %vm2484, %v2478, %v2485
        %vm2487 = vcmp.eq.s32.totalorder %v2482, 2
        %v2488 = vxor.u32 %v2478, 2147483648
        %v2489 = vsel %vm2487, %v2488, %v2479
        %v2490 = vsel %vm2483, %v2486, %v2489
        %v2491 = vsel %vm2480, nan, %v2490
        %v2492 = vand.u32 2147483647, %v2072
        %vm2493 = vcmp.le.f32.partialorder %v2492, 0.7853982
        %vm2494 = vcmp.lt.s32.totalorder %v2072, 0
        %v2495 = vand.u32 %v2072, 2139095040
        %v2496 = vshrl.u32 %v2495, 23
        %v2497 = vsub.s32 %v2496, 127
        %v2498 = vand.u32 2147483647, %v2072
        %v2499 = vand.u32 %v2498, 8388607
        %v2500 = vor.u32 %v2499, 8388608
        %v2501 = vsub.s32 0, %v2500
        %v2502 = vadd.s32 %v2497, 1
        %vm2503 = vcmp.gt.s32.totalorder %v2502, 0
        %v2504 = vsel %vm2503, %v2502, 0
        %v2505 = vshrl.u32 %v2504, 5
        %v2506 = vand.u32 %v2504, 31
        %v2507 = vsub.s32 32, %v2506
        %v2508 = vshrl.u32 683565275, %v2507
        %v2509 = vshll.u32 683565275, %v2506
        %v2510 = vshrl.u32 2475754826, %v2507
        %v2511 = vor.u32 %v2509, %v2510
        %v2512 = vshll.u32 2475754826, %v2506
        %v2513 = vshrl.u32 2131351028, %v2507
        %v2514 = vor.u32 %v2512, %v2513
        %v2515 = vshll.u32 2131351028, %v2506
        %v2516 = vshrl.u32 2102212464, %v2507
        %v2517 = vor.u32 %v2515, %v2516
        %v2518 = vshll.u32 2102212464, %v2506
        %v2519 = vshrl.u32 920167782, %v2507
        %v2520 = vor.u32 %v2518, %v2519
        %v2521 = vshll.u32 920167782, %v2506
        %v2522 = vshrl.u32 1326507024, %v2507
        %v2523 = vor.u32 %v2521, %v2522
        %vm2524 = vcmp.lt.s32.totalorder %v2505, 1
        %vm2525 = vcmp.lt.s32.totalorder %v2505, 2
        %vm2526 = vcmp.lt.s32.totalorder %v2505, 3
        %vm2527 = vcmp.lt.s32.totalorder %v2505, 4
        %v2528 = vsel %vm2524, %v2508, %v2511
        %v2529 = vsel %vm2527, %v2517, 2102212464
        %v2530 = vsel %vm2526, %v2514, %v2529
        %v2531 = vsel %vm2525, %v2528, %v2530
        %v2532 = vsel %vm2524, %v2511, %v2514
        %v2533 = vsel %vm2527, %v2520, 920167782
        %v2534 = vsel %vm2526, %v2517, %v2533
        %v2535 = vsel %vm2525, %v2532, %v2534
        %v2536 = vsel %vm2524, %v2514, %v2517
        %v2537 = vsel %vm2527, %v2523, 1326507024
        %v2538 = vsel %vm2526, %v2520, %v2537
        %v2539 = vsel %vm2525, %v2536, %v2538
        %v2540 = vshll.u32 %v2500, 8
        %v2541 = vmul.u32.u64.compose %v2540, %v2539
        %v2542 = vextract.low.u32 %v2541
        %v2543 = vextract.high.u32 %v2541
        %v2544 = vmul.u32.u64.compose %v2540, %v2535
        %v2545 = vextract.low.u32 %v2544
        %v2546 = vextract.high.u32 %v2544
        %v2547 = vmul.u32 %v2540, %v2531
        %v2548 = vadd.s32 %v2543, %v2545
        %vm2549 = vc.u32 %v2543, %v2545
        %v2550 = vadd.s32 %v2546, 1
        %v2551 = vsel %vm2549, %v2550, %v2546
        %v2552 = vadd.s32 %v2547, %v2551
        %v2553 = vadd.s32 %v2552, 536870912
        %v2554 = vshrl.u32 %v2553, 30
        %v2555 = vshll.u32 %v2554, 30
        %v2556 = vsub.s32 %v2552, %v2555
        %vm2557 = vcmp.lt.s32.totalorder %v2556, 0
        %v2558 = vsub.s32 0, %v2556
        %v2559 = vsel %vm2557, %v2558, %v2556
        %v2560 = vclz %v2559
        %v2561 = vsub.s32 %v2560, 2
        %vm2562 = vcmp.gt.s32.totalorder 0, %v2561
        %v2563 = vsel %vm2562, 0, %v2561
        %v2564 = vsub.s32 32, %v2563
        %v2565 = vshll.u32 %v2556, %v2563
        %v2566 = vshrl.u32 %v2548, %v2564
        %v2567 = vor.u32 %v2565, %v2566
        %v2568 = vsub.s32 4294967266, %v2563
        %v2569 = vadd.s32 %v2568, 127
        %v2570 = vshll.u32 %v2569, 23
        %v2571 = vor.u32 4788187, %v2570
        %v2572 = vand.u32 2147483647, %v2571
        %v2574 = vcvt.s32.f32 %v2567
        %v2575 = vmul.f32 %v2574, %v2572
        %v2576 = vxor.u32 %v2575, 2147483648
        %v2577 = vsel %vm2494, %v2576, %v2575
        %v2578 = vsub.s32 4, %v2554
        %v2579 = vsel %vm2494, %v2578, %v2554
        %v2580 = vsel %vm2493, %v2072, %v2577
        %v2581 = vsel %vm2493, 0, %v2579
        %v2582 = vcosq.f32.pop %v2580
        %v2583 = vsinq.f32.pop %v2580
        %vm2584 = vweird.f32 %v2072
        %v2585 = vadd.s32 %v2581, 3
        %v2586 = vand.u32 %v2585, 3
        %vm2587 = vcmp.lt.s32.totalorder %v2586, 2
        %vm2588 = vcmp.eq.s32.totalorder %v2586, 0
        %v2589 = vxor.u32 %v2583, 2147483648
        %v2590 = vsel %vm2588, %v2582, %v2589
        %vm2591 = vcmp.eq.s32.totalorder %v2586, 2
        %v2592 = vxor.u32 %v2582, 2147483648
        %v2593 = vsel %vm2591, %v2592, %v2583
        %v2594 = vsel %vm2587, %v2590, %v2593
        %v2595 = vsel %vm2584, nan, %v2594
        %v2596 = vand.u32 2147483647, %v2073
        %vm2597 = vcmp.le.f32.partialorder %v2596, 0.7853982
        %vm2598 = vcmp.lt.s32.totalorder %v2073, 0
        %v2599 = vand.u32 %v2073, 2139095040
        %v2600 = vshrl.u32 %v2599, 23
        %v2601 = vsub.s32 %v2600, 127
        %v2602 = vand.u32 2147483647, %v2073
        %v2603 = vand.u32 %v2602, 8388607
        %v2604 = vor.u32 %v2603, 8388608
        %v2605 = vsub.s32 0, %v2604
        %v2606 = vadd.s32 %v2601, 1
        %vm2607 = vcmp.gt.s32.totalorder %v2606, 0
        %v2608 = vsel %vm2607, %v2606, 0
        %v2609 = vshrl.u32 %v2608, 5
        %v2610 = vand.u32 %v2608, 31
        %v2611 = vsub.s32 32, %v2610
        %v2612 = vshrl.u32 683565275, %v2611
        %v2613 = vshll.u32 683565275, %v2610
        %v2614 = vshrl.u32 2475754826, %v2611
        %v2615 = vor.u32 %v2613, %v2614
        %v2616 = vshll.u32 2475754826, %v2610
        %v2617 = vshrl.u32 2131351028, %v2611
        %v2618 = vor.u32 %v2616, %v2617
        %v2619 = vshll.u32 2131351028, %v2610
        %v2620 = vshrl.u32 2102212464, %v2611
        %v2621 = vor.u32 %v2619, %v2620
        %v2622 = vshll.u32 2102212464, %v2610
        %v2623 = vshrl.u32 920167782, %v2611
        %v2624 = vor.u32 %v2622, %v2623
        %v2625 = vshll.u32 920167782, %v2610
        %v2626 = vshrl.u32 1326507024, %v2611
        %v2627 = vor.u32 %v2625, %v2626
        %vm2628 = vcmp.lt.s32.totalorder %v2609, 1
        %vm2629 = vcmp.lt.s32.totalorder %v2609, 2
        %vm2630 = vcmp.lt.s32.totalorder %v2609, 3
        %vm2631 = vcmp.lt.s32.totalorder %v2609, 4
        %v2632 = vsel %vm2628, %v2612, %v2615
        %v2633 = vsel %vm2631, %v2621, 2102212464
        %v2634 = vsel %vm2630, %v2618, %v2633
        %v2635 = vsel %vm2629, %v2632, %v2634
        %v2636 = vsel %vm2628, %v2615, %v2618
        %v2637 = vsel %vm2631, %v2624, 920167782
        %v2638 = vsel %vm2630, %v2621, %v2637
        %v2639 = vsel %vm2629, %v2636, %v2638
        %v2640 = vsel %vm2628, %v2618, %v2621
        %v2641 = vsel %vm2631, %v2627, 1326507024
        %v2642 = vsel %vm2630, %v2624, %v2641
        %v2643 = vsel %vm2629, %v2640, %v2642
        %v2644 = vshll.u32 %v2604, 8
        %v2645 = vmul.u32.u64.compose %v2644, %v2643
        %v2646 = vextract.low.u32 %v2645
        %v2647 = vextract.high.u32 %v2645
        %v2648 = vmul.u32.u64.compose %v2644, %v2639
        %v2649 = vextract.low.u32 %v2648
        %v2650 = vextract.high.u32 %v2648
        %v2651 = vmul.u32 %v2644, %v2635
        %v2652 = vadd.s32 %v2647, %v2649
        %vm2653 = vc.u32 %v2647, %v2649
        %v2654 = vadd.s32 %v2650, 1
        %v2655 = vsel %vm2653, %v2654, %v2650
        %v2656 = vadd.s32 %v2651, %v2655
        %v2657 = vadd.s32 %v2656, 536870912
        %v2658 = vshrl.u32 %v2657, 30
        %v2659 = vshll.u32 %v2658, 30
        %v2660 = vsub.s32 %v2656, %v2659
        %vm2661 = vcmp.lt.s32.totalorder %v2660, 0
        %v2662 = vsub.s32 0, %v2660
        %v2663 = vsel %vm2661, %v2662, %v2660
        %v2664 = vclz %v2663
        %v2665 = vsub.s32 %v2664, 2
        %vm2666 = vcmp.gt.s32.totalorder 0, %v2665
        %v2667 = vsel %vm2666, 0, %v2665
        %v2668 = vsub.s32 32, %v2667
        %v2669 = vshll.u32 %v2660, %v2667
        %v2670 = vshrl.u32 %v2652, %v2668
        %v2671 = vor.u32 %v2669, %v2670
        %v2672 = vsub.s32 4294967266, %v2667
        %v2673 = vadd.s32 %v2672, 127
        %v2674 = vshll.u32 %v2673, 23
        %v2675 = vor.u32 4788187, %v2674
        %v2676 = vand.u32 2147483647, %v2675
        %v2678 = vcvt.s32.f32 %v2671
        %v2679 = vmul.f32 %v2678, %v2676
        %v2680 = vxor.u32 %v2679, 2147483648
        %v2681 = vsel %vm2598, %v2680, %v2679
        %v2682 = vsub.s32 4, %v2658
        %v2683 = vsel %vm2598, %v2682, %v2658
        %v2684 = vsel %vm2597, %v2073, %v2681
        %v2685 = vsel %vm2597, 0, %v2683
        %v2686 = vcosq.f32.pop %v2684
        %v2687 = vsinq.f32.pop %v2684
        %vm2688 = vweird.f32 %v2073
        %v2689 = vadd.s32 %v2685, 3
        %v2690 = vand.u32 %v2689, 3
        %vm2691 = vcmp.lt.s32.totalorder %v2690, 2
        %vm2692 = vcmp.eq.s32.totalorder %v2690, 0
        %v2693 = vxor.u32 %v2687, 2147483648
        %v2694 = vsel %vm2692, %v2686, %v2693
        %vm2695 = vcmp.eq.s32.totalorder %v2690, 2
        %v2696 = vxor.u32 %v2686, 2147483648
        %v2697 = vsel %vm2695, %v2696, %v2687
        %v2698 = vsel %vm2691, %v2694, %v2697
        %v2699 = vsel %vm2688, nan, %v2698
        %v2700 = vand.u32 2147483647, %v2074
        %vm2701 = vcmp.le.f32.partialorder %v2700, 0.7853982
        %vm2702 = vcmp.lt.s32.totalorder %v2074, 0
        %v2703 = vand.u32 %v2074, 2139095040
        %v2704 = vshrl.u32 %v2703, 23
        %v2705 = vsub.s32 %v2704, 127
        %v2706 = vand.u32 2147483647, %v2074
        %v2707 = vand.u32 %v2706, 8388607
        %v2708 = vor.u32 %v2707, 8388608
        %v2709 = vsub.s32 0, %v2708
        %v2710 = vadd.s32 %v2705, 1
        %vm2711 = vcmp.gt.s32.totalorder %v2710, 0
        %v2712 = vsel %vm2711, %v2710, 0
        %v2713 = vshrl.u32 %v2712, 5
        %v2714 = vand.u32 %v2712, 31
        %v2715 = vsub.s32 32, %v2714
        %v2716 = vshrl.u32 683565275, %v2715
        %v2717 = vshll.u32 683565275, %v2714
        %v2718 = vshrl.u32 2475754826, %v2715
        %v2719 = vor.u32 %v2717, %v2718
        %v2720 = vshll.u32 2475754826, %v2714
        %v2721 = vshrl.u32 2131351028, %v2715
        %v2722 = vor.u32 %v2720, %v2721
        %v2723 = vshll.u32 2131351028, %v2714
        %v2724 = vshrl.u32 2102212464, %v2715
        %v2725 = vor.u32 %v2723, %v2724
        %v2726 = vshll.u32 2102212464, %v2714
        %v2727 = vshrl.u32 920167782, %v2715
        %v2728 = vor.u32 %v2726, %v2727
        %v2729 = vshll.u32 920167782, %v2714
        %v2730 = vshrl.u32 1326507024, %v2715
        %v2731 = vor.u32 %v2729, %v2730
        %vm2732 = vcmp.lt.s32.totalorder %v2713, 1
        %vm2733 = vcmp.lt.s32.totalorder %v2713, 2
        %vm2734 = vcmp.lt.s32.totalorder %v2713, 3
        %vm2735 = vcmp.lt.s32.totalorder %v2713, 4
        %v2736 = vsel %vm2732, %v2716, %v2719
        %v2737 = vsel %vm2735, %v2725, 2102212464
        %v2738 = vsel %vm2734, %v2722, %v2737
        %v2739 = vsel %vm2733, %v2736, %v2738
        %v2740 = vsel %vm2732, %v2719, %v2722
        %v2741 = vsel %vm2735, %v2728, 920167782
        %v2742 = vsel %vm2734, %v2725, %v2741
        %v2743 = vsel %vm2733, %v2740, %v2742
        %v2744 = vsel %vm2732, %v2722, %v2725
        %v2745 = vsel %vm2735, %v2731, 1326507024
        %v2746 = vsel %vm2734, %v2728, %v2745
        %v2747 = vsel %vm2733, %v2744, %v2746
        %v2748 = vshll.u32 %v2708, 8
        %v2749 = vmul.u32.u64.compose %v2748, %v2747
        %v2750 = vextract.low.u32 %v2749
        %v2751 = vextract.high.u32 %v2749
        %v2752 = vmul.u32.u64.compose %v2748, %v2743
        %v2753 = vextract.low.u32 %v2752
        %v2754 = vextract.high.u32 %v2752
        %v2755 = vmul.u32 %v2748, %v2739
        %v2756 = vadd.s32 %v2751, %v2753
        %vm2757 = vc.u32 %v2751, %v2753
        %v2758 = vadd.s32 %v2754, 1
        %v2759 = vsel %vm2757, %v2758, %v2754
        %v2760 = vadd.s32 %v2755, %v2759
        %v2761 = vadd.s32 %v2760, 536870912
        %v2762 = vshrl.u32 %v2761, 30
        %v2763 = vshll.u32 %v2762, 30
        %v2764 = vsub.s32 %v2760, %v2763
        %vm2765 = vcmp.lt.s32.totalorder %v2764, 0
        %v2766 = vsub.s32 0, %v2764
        %v2767 = vsel %vm2765, %v2766, %v2764
        %v2768 = vclz %v2767
        %v2769 = vsub.s32 %v2768, 2
        %vm2770 = vcmp.gt.s32.totalorder 0, %v2769
        %v2771 = vsel %vm2770, 0, %v2769
        %v2772 = vsub.s32 32, %v2771
        %v2773 = vshll.u32 %v2764, %v2771
        %v2774 = vshrl.u32 %v2756, %v2772
        %v2775 = vor.u32 %v2773, %v2774
        %v2776 = vsub.s32 4294967266, %v2771
        %v2777 = vadd.s32 %v2776, 127
        %v2778 = vshll.u32 %v2777, 23
        %v2779 = vor.u32 4788187, %v2778
        %v2780 = vand.u32 2147483647, %v2779
        %v2782 = vcvt.s32.f32 %v2775
        %v2783 = vmul.f32 %v2782, %v2780
        %v2784 = vxor.u32 %v2783, 2147483648
        %v2785 = vsel %vm2702, %v2784, %v2783
        %v2786 = vsub.s32 4, %v2762
        %v2787 = vsel %vm2702, %v2786, %v2762
        %v2788 = vsel %vm2701, %v2074, %v2785
        %v2789 = vsel %vm2701, 0, %v2787
        %v2790 = vcosq.f32.pop %v2788
        %v2791 = vsinq.f32.pop %v2788
        %vm2792 = vweird.f32 %v2074
        %v2793 = vadd.s32 %v2789, 3
        %v2794 = vand.u32 %v2793, 3
        %vm2795 = vcmp.lt.s32.totalorder %v2794, 2
        %vm2796 = vcmp.eq.s32.totalorder %v2794, 0
        %v2797 = vxor.u32 %v2791, 2147483648
        %v2798 = vsel %vm2796, %v2790, %v2797
        %vm2799 = vcmp.eq.s32.totalorder %v2794, 2
        %v2800 = vxor.u32 %v2790, 2147483648
        %v2801 = vsel %vm2799, %v2800, %v2791
        %v2802 = vsel %vm2795, %v2798, %v2801
        %v2803 = vsel %vm2792, nan, %v2802
        %v2804 = vand.u32 2147483647, %v2075
        %vm2805 = vcmp.le.f32.partialorder %v2804, 0.7853982
        %vm2806 = vcmp.lt.s32.totalorder %v2075, 0
        %v2807 = vand.u32 %v2075, 2139095040
        %v2808 = vshrl.u32 %v2807, 23
        %v2809 = vsub.s32 %v2808, 127
        %v2810 = vand.u32 2147483647, %v2075
        %v2811 = vand.u32 %v2810, 8388607
        %v2812 = vor.u32 %v2811, 8388608
        %v2813 = vsub.s32 0, %v2812
        %v2814 = vadd.s32 %v2809, 1
        %vm2815 = vcmp.gt.s32.totalorder %v2814, 0
        %v2816 = vsel %vm2815, %v2814, 0
        %v2817 = vshrl.u32 %v2816, 5
        %v2818 = vand.u32 %v2816, 31
        %v2819 = vsub.s32 32, %v2818
        %v2820 = vshrl.u32 683565275, %v2819
        %v2821 = vshll.u32 683565275, %v2818
        %v2822 = vshrl.u32 2475754826, %v2819
        %v2823 = vor.u32 %v2821, %v2822
        %v2824 = vshll.u32 2475754826, %v2818
        %v2825 = vshrl.u32 2131351028, %v2819
        %v2826 = vor.u32 %v2824, %v2825
        %v2827 = vshll.u32 2131351028, %v2818
        %v2828 = vshrl.u32 2102212464, %v2819
        %v2829 = vor.u32 %v2827, %v2828
        %v2830 = vshll.u32 2102212464, %v2818
        %v2831 = vshrl.u32 920167782, %v2819
        %v2832 = vor.u32 %v2830, %v2831
        %v2833 = vshll.u32 920167782, %v2818
        %v2834 = vshrl.u32 1326507024, %v2819
        %v2835 = vor.u32 %v2833, %v2834
        %vm2836 = vcmp.lt.s32.totalorder %v2817, 1
        %vm2837 = vcmp.lt.s32.totalorder %v2817, 2
        %vm2838 = vcmp.lt.s32.totalorder %v2817, 3
        %vm2839 = vcmp.lt.s32.totalorder %v2817, 4
        %v2840 = vsel %vm2836, %v2820, %v2823
        %v2841 = vsel %vm2839, %v2829, 2102212464
        %v2842 = vsel %vm2838, %v2826, %v2841
        %v2843 = vsel %vm2837, %v2840, %v2842
        %v2844 = vsel %vm2836, %v2823, %v2826
        %v2845 = vsel %vm2839, %v2832, 920167782
        %v2846 = vsel %vm2838, %v2829, %v2845
        %v2847 = vsel %vm2837, %v2844, %v2846
        %v2848 = vsel %vm2836, %v2826, %v2829
        %v2849 = vsel %vm2839, %v2835, 1326507024
        %v2850 = vsel %vm2838, %v2832, %v2849
        %v2851 = vsel %vm2837, %v2848, %v2850
        %v2852 = vshll.u32 %v2812, 8
        %v2853 = vmul.u32.u64.compose %v2852, %v2851
        %v2854 = vextract.low.u32 %v2853
        %v2855 = vextract.high.u32 %v2853
        %v2856 = vmul.u32.u64.compose %v2852, %v2847
        %v2857 = vextract.low.u32 %v2856
        %v2858 = vextract.high.u32 %v2856
        %v2859 = vmul.u32 %v2852, %v2843
        %v2860 = vadd.s32 %v2855, %v2857
        %vm2861 = vc.u32 %v2855, %v2857
        %v2862 = vadd.s32 %v2858, 1
        %v2863 = vsel %vm2861, %v2862, %v2858
        %v2864 = vadd.s32 %v2859, %v2863
        %v2865 = vadd.s32 %v2864, 536870912
        %v2866 = vshrl.u32 %v2865, 30
        %v2867 = vshll.u32 %v2866, 30
        %v2868 = vsub.s32 %v2864, %v2867
        %vm2869 = vcmp.lt.s32.totalorder %v2868, 0
        %v2870 = vsub.s32 0, %v2868
        %v2871 = vsel %vm2869, %v2870, %v2868
        %v2872 = vclz %v2871
        %v2873 = vsub.s32 %v2872, 2
        %vm2874 = vcmp.gt.s32.totalorder 0, %v2873
        %v2875 = vsel %vm2874, 0, %v2873
        %v2876 = vsub.s32 32, %v2875
        %v2877 = vshll.u32 %v2868, %v2875
        %v2878 = vshrl.u32 %v2860, %v2876
        %v2879 = vor.u32 %v2877, %v2878
        %v2880 = vsub.s32 4294967266, %v2875
        %v2881 = vadd.s32 %v2880, 127
        %v2882 = vshll.u32 %v2881, 23
        %v2883 = vor.u32 4788187, %v2882
        %v2884 = vand.u32 2147483647, %v2883
        %v2886 = vcvt.s32.f32 %v2879
        %v2887 = vmul.f32 %v2886, %v2884
        %v2888 = vxor.u32 %v2887, 2147483648
        %v2889 = vsel %vm2806, %v2888, %v2887
        %v2890 = vsub.s32 4, %v2866
        %v2891 = vsel %vm2806, %v2890, %v2866
        %v2892 = vsel %vm2805, %v2075, %v2889
        %v2893 = vsel %vm2805, 0, %v2891
        %v2894 = vcosq.f32.pop %v2892
        %v2895 = vsinq.f32.pop %v2892
        %vm2896 = vweird.f32 %v2075
        %v2897 = vadd.s32 %v2893, 3
        %v2898 = vand.u32 %v2897, 3
        %vm2899 = vcmp.lt.s32.totalorder %v2898, 2
        %vm2900 = vcmp.eq.s32.totalorder %v2898, 0
        %v2901 = vxor.u32 %v2895, 2147483648
        %v2902 = vsel %vm2900, %v2894, %v2901
        %vm2903 = vcmp.eq.s32.totalorder %v2898, 2
        %v2904 = vxor.u32 %v2894, 2147483648
        %v2905 = vsel %vm2903, %v2904, %v2895
        %v2906 = vsel %vm2899, %v2902, %v2905
        %v2907 = vsel %vm2896, nan, %v2906
        %2909 = vset.pattern.permute.xlu0 0
        %2910 = vperm.xlu0 %2909, %v806
        %v2911 = vpop.permute.xlu0 %2910
        %2914 = vset.pattern.permute.xlu0 0
        %2915 = vperm.xlu0 %2914, %v910
        %v2916 = vpop.permute.xlu0 %2915
        %2919 = vset.pattern.permute.xlu0 0
        %2920 = vperm.xlu0 %2919, %v1014
        %v2921 = vpop.permute.xlu0 %2920
        %2924 = vset.pattern.permute.xlu0 0
        %2925 = vperm.xlu0 %2924, %v1118
        %v2926 = vpop.permute.xlu0 %2925
        %v2928 = vadd.f32 %v2179, %v2911
        %v2929 = vadd.f32 %v2283, %v2911
        %v2930 = vadd.f32 %v2387, %v2916
        %v2931 = vadd.f32 %v2491, %v2916
        %v2932 = vadd.f32 %v2595, %v2921
        %v2933 = vadd.f32 %v2699, %v2921
        %v2934 = vadd.f32 %v2803, %v2926
        %v2935 = vadd.f32 %v2907, %v2926
        %2936 = vst [vmem:[%s189 + $0x40] sm:$0xff] %v2928
        %2937 = vst [vmem:[%s189 + $0x48] sm:$0xff] %v2929
        %2938 = vst [vmem:[%s189 + $0x50] sm:$0xff] %v2930
        %2939 = vst [vmem:[%s189 + $0x58] sm:$0xff] %v2931
        %2940 = vst [vmem:[%s189 + $0x60] sm:$0xff] %v2932
        %2941 = vst [vmem:[%s189 + $0x68] sm:$0xff] %v2933
        %2942 = vst [vmem:[%s189 + $0x70] sm:$0xff] %v2934
        %2943 = vst [vmem:[%s189 + $0x78] sm:$0xff] %v2935
        %s2944 = sand.u32 %s112, 1
        %s2945 = scalar_lea.sflag [#allocation3], %s2944
        %s2946 = sand.u32 %s112, 1
        %s2947 = smul.addr %s2946, 128
        %s2948 = scalar_lea.vmem [#allocation2], %s2947
        // Predicated region
        $region33: #{tpu_custom_call.1} parent=31 // pred_check
          %p2949 = pneg %p122
        $region34: #{tpu_custom_call.1} parent=31 // pred_check_branch
          %2951 = sbr.rel (%p2949) target = $region36
        $region35: #{tpu_custom_call.1} parent=31 // pred_region
          %s2952 = smul.u32 2, %s22
          %s2954 = ssub.s32 2048, 2048
          %2955 = vsyncadd %s2945, %s2954
          %s2956 = smul.addr %s21, 16
          %s2957 = sadd.s32 %s2952, %s2956
          %s2958 = smul.addr %s2957, 128
          %s2959 = scalar_lea.hbm %s3, %s2958
          %s2960 = sshll.u32 %s2948, 4
          %s2961 = int_to_ptr.vmem [resolvable:$true] %s2960
          %2966 = dma.vmem_to_hbm [thread:$0]  %s2961, 2048, %s2959, %s2945, 256, 256, 16
        $region36: #{tpu_custom_call.1} parent=31 // pred_fallthru
          _
      $region32: #{tpu_custom_call.1} parent=5 // pred_fallthru
        _
      %p2967 = scmp.le.s32.totalorder 2, %s12
      // Predicated region
      $region37: #{tpu_custom_call.1} parent=5 // pred_check
        %p2968 = pneg %p2967
      $region38: #{tpu_custom_call.1} parent=5 // pred_check_branch
        %2970 = sbr.rel (%p2968) target = $region40
      $region39: #{tpu_custom_call.1} parent=5 // pred_region
        %s2971 = ssub.s32 %s12, 2
        // Predicated region
        $region41: #{tpu_custom_call.1} parent=39 // pred_check
          %p2972 = pneg %p128
        $region42: #{tpu_custom_call.1} parent=39 // pred_check_branch
          %2974 = sbr.rel (%p2972) target = $region44
        $region43: #{tpu_custom_call.1} parent=39 // pred_region
          %s2975 = sand.u32 %s113, 1
          %s2976 = scalar_lea.sflag [#allocation3], %s2975
          %s2977 = sand.u32 %s113, 1
          %s2978 = smul.addr %s2977, 128
          %s2979 = scalar_lea.vmem [#allocation2], %s2978
          %2980 = dma.done %s2976, 2048
        $region44: #{tpu_custom_call.1} parent=39 // pred_fallthru
          _
      $region40: #{tpu_custom_call.1} parent=5 // pred_fallthru
        _
    $region6: #{tpu_custom_call.1} parent=1 // loop_footer
      %s16 = sadd.s32 1, %s12
    $region7: #{tpu_custom_call.1} parent=1 // loop_footer_branch
      %11 = sbr.rel target = $region3
    $region8: #{tpu_custom_call.1} parent=1 // loop_exit
      _
    %2981 = vsyncpa [#allocation3], 1
    %s2982 = scalar_lea.sflag [#allocation3], 1
    %2983 = vsyncpa %s2982, 1

</llo_original>
